<compile_context>
chip_gen: v7x
topology: tpu7x:2x2x1
jax: 0.10.0
libtpu: 0.0.40
codegen_flags: <defaults>
</compile_context>

<pallas_src>
import functools

import numpy as np
import jax
import jax.numpy as jnp
from jax.experimental import pallas as pl
from jax.experimental.pallas import tpu as pltpu

EPSILON = 1e-10


# ----------------------------- Pallas kernel --------------------------------
def audio_model_kernel(frames_ref, basis_ref,
                       wf_ref, bf_ref, wt_ref, bt_ref,
                       w1_ref, b1_ref, w2_ref, b2_ref,
                       w3_ref, b3_ref, w4_ref, b4_ref, w5_ref,
                       out_ref, *, t_out):
    NB, T_pad, nfft = frames_ref.shape
    R = NB * T_pad                                    # multiple of 8 (T_pad % 8 == 0)

    # ---- STFT magnitude + log: one fused (cos|sin) MXU matmul over all NB*T_pad
    # frames (bf16 x bf16 -> f32 accumulation).  Reshape is tile-aligned. ----
    fr = frames_ref[...].reshape(R, nfft)                               # bf16
    spec = jnp.dot(fr, basis_ref[...], preferred_element_type=jnp.float32)
    re = spec[:, :128]
    im = spec[:, 128:]
    # log(sqrt(p)+eps) == 0.5*log(p + 2*eps*sqrt(p) + eps^2) ~= 0.5*log(p+eps^2)
    # (deliberate deviation; cross term negligible at eps=1e-10).
    z = 0.5 * jnp.log(re * re + im * im + EPSILON * EPSILON)            # (R, 128) f32

    # ---- CNN_freq: Conv2d(1,128,(128,1),stride=(2,1)); region_v == 1, so the
    # single valid frequency position is a (128 -> 128) matmul per frame. ----
    h1 = jnp.dot(z.astype(jnp.bfloat16), wf_ref[...],
                 preferred_element_type=jnp.float32) + bf_ref[...]
    h1 = jnp.maximum(h1, 0.0)                                           # (R, 128) f32

    # ---- CNN_time: Conv2d(128,256,(1,3)) fused into ONE K=384 matmul.  The
    # 3-tap time shift is done on the flat row slab; rows that wrap across a
    # sample boundary (or use zero-padded frames) fall at t >= t_out and are
    # masked out of the time-sum below.  Slabs cast to bf16 before the concat
    # so the MXU operand build moves half the bytes. ----
    def shift_rows(a, k):
        return jnp.concatenate([a[k:], a[:k]], axis=0)                  # == jnp.roll(a, -k, 0)

    h1_cat = jnp.concatenate(
        [h1.astype(jnp.bfloat16)]
        + [shift_rows(h1, k).astype(jnp.bfloat16) for k in (1, 2)],
        axis=1)                                                         # (R, 384) bf16
    h2 = jnp.dot(h1_cat, wt_ref[...],
                 preferred_element_type=jnp.float32) + bt_ref[...]
    h2 = jnp.maximum(h2, 0.0)                                           # (R, 256) f32

    # Masked time-sum: only conv positions t < t_out are valid; 1/t_out of the
    # mean is folded into w1 in the wrapper.
    t_idx = jax.lax.broadcasted_iota(jnp.int32, (NB, T_pad, 1), 1)
    h2m = jnp.where(t_idx < t_out, h2.reshape(NB, T_pad, h2.shape[-1]), 0.0)
    h3 = jnp.sum(h2m, axis=1)                                           # (NB, 256) f32, >= 0

    # ---- MLP head, once per block with M = NB.  h3 >= 0 (sum of ReLU outputs),
    # so the leading relu of the original module is a no-op. ----
    def dense(a, w_r, b_r):
        return jnp.dot(a.astype(jnp.bfloat16), w_r[...],
                       preferred_element_type=jnp.float32) + b_r[...]

    y = jnp.maximum(dense(h3, w1_ref, b1_ref), 0.0)
    y = jnp.maximum(dense(y, w2_ref, b2_ref), 0.0)
    y = jnp.maximum(dense(y, w3_ref, b3_ref), 0.0)
    y = jnp.maximum(dense(y, w4_ref, b4_ref), 0.0)
    # Final 64 -> 1 projection on the VPU (multiply + lane reduce) instead of a
    # 1-lane MXU drain; w5 is passed as an f32 (1, 64) row.
    logits = jnp.sum(y * w5_ref[...], axis=-1, keepdims=True)           # (NB, 1) f32
    out_ref[...] = jax.nn.sigmoid(logits).reshape(1, 1, NB)             # lane-dense row


# ------------------------------- glue / wrapper ------------------------------
def _frame(x, n_fft):
    """Reflect-pad (center=True) and frame the signal: (B, L) -> (B, T, n_fft)."""
    # TODO(synk): for long signals, build frames inside the kernel with strided
    # pl.ds reads of the reflect-padded signal (memory_space=pl.ANY) to avoid
    # the 4x-overlapped frames array in HBM and the XLA gather below.
    hop = n_fft // 4
    half = n_fft // 2
    xp = jnp.pad(x, ((0, 0), (half, half)), mode="reflect")
    T = 1 + (xp.shape[1] - n_fft) // hop
    idx = jnp.arange(T)[:, None] * hop + jnp.arange(n_fft)[None, :]
    return xp[:, idx].astype(jnp.float32)                               # (B, T, n_fft)


def audio_model_forward(x, params, n_fft, block_b=128):
    B = x.shape[0]
    n_bins = n_fft // 2
    region_v = 1 + (n_bins - 128) // 2
    assert region_v == 1, "kernel specialises region_v == 1 (n_fft == 256)"
    # TODO(synk): generalise to region_v > 1 (loop over frequency positions).

    frames = _frame(x, n_fft)                                           # (B, T, n_fft) f32
    T = frames.shape[1]
    T_out = T - 2

    # Pad the frame axis to a multiple of 8 so all in-kernel reshapes / row
    # shifts stay (8,128)-tile aligned; padded rows are masked out of the
    # time-sum inside the kernel.
    T_pad = ((T + 7) // 8) * 8
    if T_pad != T:
        frames = jnp.pad(frames, ((0, 0), (0, T_pad - T), (0, 0)))
    frames = frames.astype(jnp.bfloat16)

    # Samples per grid step: fill the MXU M dimension, but keep >= 2 grid steps
    # when possible so the "parallel" batch axis can shard across both
    # TensorCores on v7x (no effect on single-TC v5e/v6e).
    NB = min(B, block_b)
    if NB == B and B > 1:
        NB = (B + 1) // 2
    num_blocks = (B + NB - 1) // NB
    B_pad = num_blocks * NB
    if B_pad != B:
        frames = jnp.pad(frames, ((0, B_pad - B), (0, 0), (0, 0)))

    p = params
    bf16 = lambda a: a.astype(jnp.bfloat16)
    weights = [
        bf16(p["basis"]),                                               # (n_fft, 256)
        bf16(p["wf"]), p["bf"],                                         # (128,128),(1,128)
        bf16(p["wt"].reshape(-1, p["wt"].shape[-1])), p["bt"],          # (384,256),(1,256)
        bf16(p["w1"] * (1.0 / T_out)), p["b1"],                         # time-mean folded in
        bf16(p["w2"]), p["b2"],
        bf16(p["w3"]), p["b3"],
        bf16(p["w4"]), p["b4"],
        p["w5"].reshape(1, -1).astype(jnp.float32),                     # (1,64) f32 (VPU)
    ]

    def full_spec(arr):
        zeros = (0,) * arr.ndim
        return pl.BlockSpec(arr.shape, lambda b, z=zeros: z)

    in_specs = [pl.BlockSpec((NB, T_pad, n_fft), lambda b: (b, 0, 0))]
    in_specs += [full_spec(w) for w in weights]
    # NOTE: weight blocks are constant-index; they still get double-buffered by
    # the pipeline (~1 MB).  Acceptable even on v7x's 64 MiB VMEM at NB<=256.

    # Rough per-block VMEM footprint -> scoped-VMEM limit (v5e default is only
    # 16 MiB; cap at v7x's 64 MiB physical).
    rows = NB * T_pad
    slab_bytes = rows * (n_fft * 2 * 2        # frames (bf16, double-buffered)
                         + 256 * 4            # spec
                         + 128 * 4 * 3        # z, h1, shifted slab copies
                         + 384 * 2            # h1_cat (bf16)
                         + 256 * 4 * 2)       # h2 + masked h2
    w_bytes = 2 * sum(int(w.size) * w.dtype.itemsize for w in weights)
    vmem_limit = int(min(64 * 2**20, max(32 * 2**20, 1.25 * (slab_bytes + w_bytes))))

    flops = (2 * B_pad * T_pad * (n_fft * 256 + 128 * 128 + 384 * 256)
             + 2 * B_pad * (256 * 512 + 512 * 256 + 256 * 128 + 128 * 64 + 64))
    bytes_accessed = int(frames.size * frames.dtype.itemsize
                         + sum(int(w.size) * w.dtype.itemsize for w in weights)
                         + B_pad * 4)

    out = pl.pallas_call(
        functools.partial(audio_model_kernel, t_out=T_out),
        out_shape=jax.ShapeDtypeStruct((num_blocks, 1, NB), jnp.float32),
        grid=(num_blocks,),
        in_specs=in_specs,
        out_specs=pl.BlockSpec((1, 1, NB), lambda b: (b, 0, 0)),
        compiler_params=pltpu.CompilerParams(
            dimension_semantics=("parallel",),
            vmem_limit_bytes=vmem_limit),
        cost_estimate=pl.CostEstimate(
            flops=int(flops),
            transcendentals=int(B_pad * T_pad * 128 + B_pad),
            bytes_accessed=bytes_accessed),
    )(frames, *weights)
    return out.reshape(B_pad, 1)[:B]                                    # (B, 1)


# ------------------------------ parameter init -------------------------------
def init_params(key, n_fft):
    half = n_fft // 2                                                   # 128 bins used
    k_out, k2_out = 128, 256
    region_v = 1 + (half - 128) // 2

    # Hann-windowed Fourier basis (nnAudio STFT kernels, trainable init).
    # Only bins [0, 128) are consumed downstream, so the Nyquist bin is dropped
    # and cos/sin are fused along lanes into one (n_fft, 256) matrix.
    n = jnp.arange(n_fft, dtype=jnp.float32)
    kk = jnp.arange(half, dtype=jnp.float32)
    hann = 0.5 - 0.5 * jnp.cos(2.0 * jnp.pi * n / n_fft)
    ang = 2.0 * jnp.pi * kk[None, :] * n[:, None] / n_fft               # (n_fft, 128)
    cos_b = jnp.cos(ang) * hann[:, None]
    sin_b = jnp.sin(ang) * hann[:, None]
    basis = jnp.concatenate([cos_b, sin_b], axis=1).astype(jnp.float32)  # (n_fft, 256)

    ks = jax.random.split(key, 7)

    def w(k_, shape, fan_in):
        return (jax.random.normal(k_, shape, jnp.float32) / np.sqrt(fan_in)).astype(jnp.float32)

    return dict(
        basis=basis,
        # CNN_freq weight reshaped to (in_freq, out); CNN_time to (k, in_c, out).
        wf=w(ks[0], (128, k_out), 128.0),
        bf=jnp.full((1, k_out), 0.01, jnp.float32),
        wt=w(ks[1], (3, k_out, k2_out), 3.0 * k_out),
        bt=jnp.full((1, k2_out), 0.01, jnp.float32),
        w1=w(ks[2], (k2_out * region_v, 512), k2_out * region_v),
        b1=jnp.zeros((1, 512), jnp.float32),
        w2=w(ks[3], (512, 256), 512.0), b2=jnp.zeros((1, 256), jnp.float32),
        w3=w(ks[4], (256, 128), 256.0), b3=jnp.zeros((1, 128), jnp.float32),
        w4=w(ks[5], (128, 64), 128.0), b4=jnp.zeros((1, 64), jnp.float32),
        w5=w(ks[6], (64, 1), 64.0),
    )


# ------------------------------ pure-JAX reference ---------------------------
def reference_forward(x, params, n_fft):
    """Faithful f32 transcription of the PyTorch forward (original formulas)."""
    p = params
    frames = _frame(x, n_fft)                                           # (B, T, n_fft) f32
    spec = frames @ p["basis"]                                          # (B, T, 256)
    re, im = spec[..., :128], spec[..., 128:]
    z = jnp.log(jnp.sqrt(re * re + im * im) + EPSILON)                  # (B, T, 128)
    h1 = jax.nn.relu(z @ p["wf"] + p["bf"])                             # (B, T, 128)
    T = h1.shape[1]
    T_out = T - 2
    acc = jnp.zeros((x.shape[0], T_out, p["wt"].shape[2]), jnp.float32) + p["bt"]
    for k in range(3):
        acc = acc + jnp.einsum("btc,co->bto", h1[:, k:k + T_out, :], p["wt"][k])
    h2 = jax.nn.relu(acc)
    h3 = jnp.mean(h2, axis=1)                                           # (B, 256)
    y = jax.nn.relu(h3)
    y = jax.nn.relu(y @ p["w1"] + p["b1"])
    y = jax.nn.relu(y @ p["w2"] + p["b2"])
    y = jax.nn.relu(y @ p["w3"] + p["b3"])
    y = jax.nn.relu(y @ p["w4"] + p["b4"])
    y = y @ p["w5"]
    return jax.nn.sigmoid(y)                                            # (B, 1)


if __name__ == "__main__":
    n_fft = 256          # -> n_bins = 128, region_v = 1
    B, L = 2, 1024       # small batch / signal length; T = 17 STFT frames

    key = jax.random.PRNGKey(0)
    kx, kp = jax.random.split(key)
    x = jax.random.normal(kx, (B, L), jnp.float32)
    params = init_params(kp, n_fft)

    out = audio_model_forward(x, params, n_fft)
    out = jax.block_until_ready(out)

    ref = reference_forward(x, params, n_fft)
    assert out.shape == (B, 1)
    np.testing.assert_allclose(np.asarray(out), np.asarray(ref), rtol=5e-2, atol=2e-2)

    print("KERNEL_OK")
</pallas_src>

<mosaic_0001>
module attributes {stable_mosaic.version = 11 : i64} {
  func.func @audio_model_kernel(%arg0: i32, %arg1: memref<1x24x256xbf16, #tpu.memory_space<vmem>>, %arg2: memref<256x256xbf16, #tpu.memory_space<vmem>>, %arg3: memref<128x128xbf16, #tpu.memory_space<vmem>>, %arg4: memref<1x128xf32, #tpu.memory_space<vmem>>, %arg5: memref<384x256xbf16, #tpu.memory_space<vmem>>, %arg6: memref<1x256xf32, #tpu.memory_space<vmem>>, %arg7: memref<256x512xbf16, #tpu.memory_space<vmem>>, %arg8: memref<1x512xf32, #tpu.memory_space<vmem>>, %arg9: memref<512x256xbf16, #tpu.memory_space<vmem>>, %arg10: memref<1x256xf32, #tpu.memory_space<vmem>>, %arg11: memref<256x128xbf16, #tpu.memory_space<vmem>>, %arg12: memref<1x128xf32, #tpu.memory_space<vmem>>, %arg13: memref<128x64xbf16, #tpu.memory_space<vmem>>, %arg14: memref<1x64xf32, #tpu.memory_space<vmem>>, %arg15: memref<1x64xf32, #tpu.memory_space<vmem>>, %arg16: memref<1x1x1xf32, #tpu.memory_space<vmem>>) attributes {dimension_semantics = [#tpu.dimension_semantics<parallel>], iteration_bounds = array<i64: 2>, scalar_prefetch = 0 : i64, scratch_operands = 0 : i64, tpu.core_type = #tpu.core_type<tc>, window_params = [{transform_indices = @transform_0, window_bounds = array<i64: 1, 24, 256>}, {pipeline_mode = #tpu.pipeline_mode<synchronous>, transform_indices = @transform_1, window_bounds = array<i64: 256, 256>}, {pipeline_mode = #tpu.pipeline_mode<synchronous>, transform_indices = @transform_2, window_bounds = array<i64: 128, 128>}, {pipeline_mode = #tpu.pipeline_mode<synchronous>, transform_indices = @transform_3, window_bounds = array<i64: 1, 128>}, {pipeline_mode = #tpu.pipeline_mode<synchronous>, transform_indices = @transform_4, window_bounds = array<i64: 384, 256>}, {pipeline_mode = #tpu.pipeline_mode<synchronous>, transform_indices = @transform_5, window_bounds = array<i64: 1, 256>}, {pipeline_mode = #tpu.pipeline_mode<synchronous>, transform_indices = @transform_6, window_bounds = array<i64: 256, 512>}, {pipeline_mode = #tpu.pipeline_mode<synchronous>, transform_indices = @transform_7, window_bounds = array<i64: 1, 512>}, {pipeline_mode = #tpu.pipeline_mode<synchronous>, transform_indices = @transform_8, window_bounds = array<i64: 512, 256>}, {pipeline_mode = #tpu.pipeline_mode<synchronous>, transform_indices = @transform_9, window_bounds = array<i64: 1, 256>}, {pipeline_mode = #tpu.pipeline_mode<synchronous>, transform_indices = @transform_10, window_bounds = array<i64: 256, 128>}, {pipeline_mode = #tpu.pipeline_mode<synchronous>, transform_indices = @transform_11, window_bounds = array<i64: 1, 128>}, {pipeline_mode = #tpu.pipeline_mode<synchronous>, transform_indices = @transform_12, window_bounds = array<i64: 128, 64>}, {pipeline_mode = #tpu.pipeline_mode<synchronous>, transform_indices = @transform_13, window_bounds = array<i64: 1, 64>}, {pipeline_mode = #tpu.pipeline_mode<synchronous>, transform_indices = @transform_14, window_bounds = array<i64: 1, 64>}, {transform_indices = @transform_15, window_bounds = array<i64: 1, 1, 1>}]} {
    %c0 = arith.constant 0 : index
    %c0_0 = arith.constant 0 : index
    %c0_1 = arith.constant 0 : index
    %0 = vector.load %arg1[%c0, %c0_0, %c0_1] : memref<1x24x256xbf16, #tpu.memory_space<vmem>>, vector<1x24x256xbf16>
    %1 = vector.shape_cast %0 : vector<1x24x256xbf16> to vector<24x256xbf16>
    %c0_2 = arith.constant 0 : index
    %c0_3 = arith.constant 0 : index
    %2 = vector.load %arg2[%c0_2, %c0_3] : memref<256x256xbf16, #tpu.memory_space<vmem>>, vector<256x256xbf16>
    %cst = arith.constant dense<0.000000e+00> : vector<24x256xf32>
    %3 = tpu.matmul %1, %2, %cst {dimension_numbers = #tpu.dot_dimension_numbers<[1], [0], [0], [1], [0, 0, 1, 1], [], []>} : vector<24x256xbf16>, vector<256x256xbf16>, vector<24x256xf32> -> vector<24x256xf32>
    %4 = vector.extract_strided_slice %3 {offsets = [0, 0], sizes = [24, 128], strides = [1, 1]} : vector<24x256xf32> to vector<24x128xf32>
    %5 = vector.extract_strided_slice %3 {offsets = [0, 128], sizes = [24, 128], strides = [1, 1]} : vector<24x256xf32> to vector<24x128xf32>
    %6 = arith.mulf %4, %4 : vector<24x128xf32>
    %7 = arith.mulf %5, %5 : vector<24x128xf32>
    %8 = arith.addf %6, %7 : vector<24x128xf32>
    %cst_4 = arith.constant 9.99999968E-21 : f32
    %9 = vector.broadcast %cst_4 : f32 to vector<24x128xf32>
    %10 = arith.addf %8, %9 : vector<24x128xf32>
    %11 = math.log %10 : vector<24x128xf32>
    %cst_5 = arith.constant 5.000000e-01 : f32
    %12 = vector.broadcast %cst_5 : f32 to vector<24x128xf32>
    %13 = arith.mulf %12, %11 : vector<24x128xf32>
    %14 = arith.truncf %13 : vector<24x128xf32> to vector<24x128xbf16>
    %c0_6 = arith.constant 0 : index
    %c0_7 = arith.constant 0 : index
    %15 = vector.load %arg3[%c0_6, %c0_7] : memref<128x128xbf16, #tpu.memory_space<vmem>>, vector<128x128xbf16>
    %cst_8 = arith.constant dense<0.000000e+00> : vector<24x128xf32>
    %16 = tpu.matmul %14, %15, %cst_8 {dimension_numbers = #tpu.dot_dimension_numbers<[1], [0], [0], [1], [0, 0, 1, 1], [], []>} : vector<24x128xbf16>, vector<128x128xbf16>, vector<24x128xf32> -> vector<24x128xf32>
    %c0_9 = arith.constant 0 : index
    %c0_10 = arith.constant 0 : index
    %17 = vector.load %arg4[%c0_9, %c0_10] : memref<1x128xf32, #tpu.memory_space<vmem>>, vector<1x128xf32>
    %18 = vector.broadcast %17 : vector<1x128xf32> to vector<24x128xf32>
    %19 = arith.addf %16, %18 : vector<24x128xf32>
    %cst_11 = arith.constant 0.000000e+00 : f32
    %20 = vector.broadcast %cst_11 : f32 to vector<24x128xf32>
    %21 = arith.maximumf %19, %20 : vector<24x128xf32>
    %22 = arith.truncf %21 : vector<24x128xf32> to vector<24x128xbf16>
    %23 = vector.extract_strided_slice %21 {offsets = [1, 0], sizes = [23, 128], strides = [1, 1]} : vector<24x128xf32> to vector<23x128xf32>
    %24 = vector.extract_strided_slice %21 {offsets = [0, 0], sizes = [1, 128], strides = [1, 1]} : vector<24x128xf32> to vector<1x128xf32>
    %25 = tpu.concatenate %23, %24 in 0 : vector<23x128xf32>, vector<1x128xf32> -> vector<24x128xf32>
    %26 = arith.truncf %25 : vector<24x128xf32> to vector<24x128xbf16>
    %27 = vector.extract_strided_slice %21 {offsets = [2, 0], sizes = [22, 128], strides = [1, 1]} : vector<24x128xf32> to vector<22x128xf32>
    %28 = vector.extract_strided_slice %21 {offsets = [0, 0], sizes = [2, 128], strides = [1, 1]} : vector<24x128xf32> to vector<2x128xf32>
    %29 = tpu.concatenate %27, %28 in 0 : vector<22x128xf32>, vector<2x128xf32> -> vector<24x128xf32>
    %30 = arith.truncf %29 : vector<24x128xf32> to vector<24x128xbf16>
    %31 = tpu.concatenate %22, %26, %30 in 1 : vector<24x128xbf16>, vector<24x128xbf16>, vector<24x128xbf16> -> vector<24x384xbf16>
    %c0_12 = arith.constant 0 : index
    %c0_13 = arith.constant 0 : index
    %32 = vector.load %arg5[%c0_12, %c0_13] : memref<384x256xbf16, #tpu.memory_space<vmem>>, vector<384x256xbf16>
    %cst_14 = arith.constant dense<0.000000e+00> : vector<24x256xf32>
    %33 = tpu.matmul %31, %32, %cst_14 {dimension_numbers = #tpu.dot_dimension_numbers<[1], [0], [0], [1], [0, 0, 1, 1], [], []>} : vector<24x384xbf16>, vector<384x256xbf16>, vector<24x256xf32> -> vector<24x256xf32>
    %c0_15 = arith.constant 0 : index
    %c0_16 = arith.constant 0 : index
    %34 = vector.load %arg6[%c0_15, %c0_16] : memref<1x256xf32, #tpu.memory_space<vmem>>, vector<1x256xf32>
    %35 = vector.broadcast %34 : vector<1x256xf32> to vector<24x256xf32>
    %36 = arith.addf %33, %35 : vector<24x256xf32>
    %cst_17 = arith.constant 0.000000e+00 : f32
    %37 = vector.broadcast %cst_17 : f32 to vector<24x256xf32>
    %38 = arith.maximumf %36, %37 : vector<24x256xf32>
    %39 = tpu.iota {dimensions = array<i32: 1>} : vector<1x24x1xi32>
    %c15_i32 = arith.constant 15 : i32
    %40 = vector.broadcast %c15_i32 : i32 to vector<1x24x1xi32>
    %41 = arith.cmpi slt, %39, %40 : vector<1x24x1xi32>
    %42 = vector.shape_cast %38 : vector<24x256xf32> to vector<1x24x256xf32>
    %cst_18 = arith.constant 0.000000e+00 : f32
    %43 = vector.shape_cast %41 : vector<1x24x1xi1> to vector<1x24x1xi1>
    %44 = vector.broadcast %43 : vector<1x24x1xi1> to vector<1x24x256xi1>
    %45 = vector.broadcast %cst_18 : f32 to vector<1x24x256xf32>
    %46 = arith.select %44, %42, %45 : vector<1x24x256xi1>, vector<1x24x256xf32>
    %cst_19 = arith.constant dense<0.000000e+00> : vector<1x256xf32>
    %47 = vector.multi_reduction <add>, %46, %cst_19 [1] : vector<1x24x256xf32> to vector<1x256xf32>
    %48 = arith.truncf %47 : vector<1x256xf32> to vector<1x256xbf16>
    %c0_20 = arith.constant 0 : index
    %c0_21 = arith.constant 0 : index
    %49 = vector.load %arg7[%c0_20, %c0_21] : memref<256x512xbf16, #tpu.memory_space<vmem>>, vector<256x512xbf16>
    %cst_22 = arith.constant dense<0.000000e+00> : vector<1x512xf32>
    %50 = tpu.matmul %48, %49, %cst_22 {dimension_numbers = #tpu.dot_dimension_numbers<[1], [0], [0], [1], [0, 0, 1, 1], [], []>} : vector<1x256xbf16>, vector<256x512xbf16>, vector<1x512xf32> -> vector<1x512xf32>
    %c0_23 = arith.constant 0 : index
    %c0_24 = arith.constant 0 : index
    %51 = vector.load %arg8[%c0_23, %c0_24] : memref<1x512xf32, #tpu.memory_space<vmem>>, vector<1x512xf32>
    %52 = arith.addf %50, %51 : vector<1x512xf32>
    %cst_25 = arith.constant 0.000000e+00 : f32
    %53 = vector.broadcast %cst_25 : f32 to vector<1x512xf32>
    %54 = arith.maximumf %52, %53 : vector<1x512xf32>
    %55 = arith.truncf %54 : vector<1x512xf32> to vector<1x512xbf16>
    %c0_26 = arith.constant 0 : index
    %c0_27 = arith.constant 0 : index
    %56 = vector.load %arg9[%c0_26, %c0_27] : memref<512x256xbf16, #tpu.memory_space<vmem>>, vector<512x256xbf16>
    %cst_28 = arith.constant dense<0.000000e+00> : vector<1x256xf32>
    %57 = tpu.matmul %55, %56, %cst_28 {dimension_numbers = #tpu.dot_dimension_numbers<[1], [0], [0], [1], [0, 0, 1, 1], [], []>} : vector<1x512xbf16>, vector<512x256xbf16>, vector<1x256xf32> -> vector<1x256xf32>
    %c0_29 = arith.constant 0 : index
    %c0_30 = arith.constant 0 : index
    %58 = vector.load %arg10[%c0_29, %c0_30] : memref<1x256xf32, #tpu.memory_space<vmem>>, vector<1x256xf32>
    %59 = arith.addf %57, %58 : vector<1x256xf32>
    %cst_31 = arith.constant 0.000000e+00 : f32
    %60 = vector.broadcast %cst_31 : f32 to vector<1x256xf32>
    %61 = arith.maximumf %59, %60 : vector<1x256xf32>
    %62 = arith.truncf %61 : vector<1x256xf32> to vector<1x256xbf16>
    %c0_32 = arith.constant 0 : index
    %c0_33 = arith.constant 0 : index
    %63 = vector.load %arg11[%c0_32, %c0_33] : memref<256x128xbf16, #tpu.memory_space<vmem>>, vector<256x128xbf16>
    %cst_34 = arith.constant dense<0.000000e+00> : vector<1x128xf32>
    %64 = tpu.matmul %62, %63, %cst_34 {dimension_numbers = #tpu.dot_dimension_numbers<[1], [0], [0], [1], [0, 0, 1, 1], [], []>} : vector<1x256xbf16>, vector<256x128xbf16>, vector<1x128xf32> -> vector<1x128xf32>
    %c0_35 = arith.constant 0 : index
    %c0_36 = arith.constant 0 : index
    %65 = vector.load %arg12[%c0_35, %c0_36] : memref<1x128xf32, #tpu.memory_space<vmem>>, vector<1x128xf32>
    %66 = arith.addf %64, %65 : vector<1x128xf32>
    %cst_37 = arith.constant 0.000000e+00 : f32
    %67 = vector.broadcast %cst_37 : f32 to vector<1x128xf32>
    %68 = arith.maximumf %66, %67 : vector<1x128xf32>
    %69 = arith.truncf %68 : vector<1x128xf32> to vector<1x128xbf16>
    %c0_38 = arith.constant 0 : index
    %c0_39 = arith.constant 0 : index
    %70 = vector.load %arg13[%c0_38, %c0_39] : memref<128x64xbf16, #tpu.memory_space<vmem>>, vector<128x64xbf16>
    %cst_40 = arith.constant dense<0.000000e+00> : vector<1x64xf32>
    %71 = tpu.matmul %69, %70, %cst_40 {dimension_numbers = #tpu.dot_dimension_numbers<[1], [0], [0], [1], [0, 0, 1, 1], [], []>} : vector<1x128xbf16>, vector<128x64xbf16>, vector<1x64xf32> -> vector<1x64xf32>
    %c0_41 = arith.constant 0 : index
    %c0_42 = arith.constant 0 : index
    %72 = vector.load %arg14[%c0_41, %c0_42] : memref<1x64xf32, #tpu.memory_space<vmem>>, vector<1x64xf32>
    %73 = arith.addf %71, %72 : vector<1x64xf32>
    %cst_43 = arith.constant 0.000000e+00 : f32
    %74 = vector.broadcast %cst_43 : f32 to vector<1x64xf32>
    %75 = arith.maximumf %73, %74 : vector<1x64xf32>
    %c0_44 = arith.constant 0 : index
    %c0_45 = arith.constant 0 : index
    %76 = vector.load %arg15[%c0_44, %c0_45] : memref<1x64xf32, #tpu.memory_space<vmem>>, vector<1x64xf32>
    %77 = arith.mulf %75, %76 : vector<1x64xf32>
    %cst_46 = arith.constant dense<0.000000e+00> : vector<1xf32>
    %78 = vector.multi_reduction <add>, %77, %cst_46 [1] : vector<1x64xf32> to vector<1xf32>
    %79 = vector.shape_cast %78 : vector<1xf32> to vector<1x1xf32>
    %80 = arith.negf %79 : vector<1x1xf32>
    %81 = math.exp %80 : vector<1x1xf32>
    %cst_47 = arith.constant 1.000000e+00 : f32
    %82 = vector.broadcast %cst_47 : f32 to vector<1x1xf32>
    %83 = arith.addf %82, %81 : vector<1x1xf32>
    %84 = arith.divf %82, %83 : vector<1x1xf32>
    %85 = vector.shape_cast %84 : vector<1x1xf32> to vector<1x1x1xf32>
    %c0_48 = arith.constant 0 : index
    %c0_49 = arith.constant 0 : index
    %c0_50 = arith.constant 0 : index
    %86 = vector.load %arg16[%c0_48, %c0_49, %c0_50] : memref<1x1x1xf32, #tpu.memory_space<vmem>>, vector<1x1x1xf32>
    tpu.vector_store %arg16[%c0_48, %c0_49, %c0_50], %85 {strides = array<i32>} : memref<1x1x1xf32, #tpu.memory_space<vmem>>, vector<1x1x1xf32>,
    return
  }
  func.func @transform_0(%arg0: i32) -> (i32, i32, i32) {
    %c0_i32 = arith.constant 0 : i32
    %c0_i32_0 = arith.constant 0 : i32
    %c0_i32_1 = arith.constant 0 : i32
    return %arg0, %c0_i32, %c0_i32_0 : i32, i32, i32
  }
  func.func @transform_1(%arg0: i32) -> (i32, i32) {
    %c0_i32 = arith.constant 0 : i32
    %c0_i32_0 = arith.constant 0 : i32
    %c0_i32_1 = arith.constant 0 : i32
    return %c0_i32, %c0_i32_0 : i32, i32
  }
  func.func @transform_2(%arg0: i32) -> (i32, i32) {
    %c0_i32 = arith.constant 0 : i32
    %c0_i32_0 = arith.constant 0 : i32
    %c0_i32_1 = arith.constant 0 : i32
    return %c0_i32, %c0_i32_0 : i32, i32
  }
  func.func @transform_3(%arg0: i32) -> (i32, i32) {
    %c0_i32 = arith.constant 0 : i32
    %c0_i32_0 = arith.constant 0 : i32
    %c0_i32_1 = arith.constant 0 : i32
    return %c0_i32, %c0_i32_0 : i32, i32
  }
  func.func @transform_4(%arg0: i32) -> (i32, i32) {
    %c0_i32 = arith.constant 0 : i32
    %c0_i32_0 = arith.constant 0 : i32
    %c0_i32_1 = arith.constant 0 : i32
    return %c0_i32, %c0_i32_0 : i32, i32
  }
  func.func @transform_5(%arg0: i32) -> (i32, i32) {
    %c0_i32 = arith.constant 0 : i32
    %c0_i32_0 = arith.constant 0 : i32
    %c0_i32_1 = arith.constant 0 : i32
    return %c0_i32, %c0_i32_0 : i32, i32
  }
  func.func @transform_6(%arg0: i32) -> (i32, i32) {
    %c0_i32 = arith.constant 0 : i32
    %c0_i32_0 = arith.constant 0 : i32
    %c0_i32_1 = arith.constant 0 : i32
    return %c0_i32, %c0_i32_0 : i32, i32
  }
  func.func @transform_7(%arg0: i32) -> (i32, i32) {
    %c0_i32 = arith.constant 0 : i32
    %c0_i32_0 = arith.constant 0 : i32
    %c0_i32_1 = arith.constant 0 : i32
    return %c0_i32, %c0_i32_0 : i32, i32
  }
  func.func @transform_8(%arg0: i32) -> (i32, i32) {
    %c0_i32 = arith.constant 0 : i32
    %c0_i32_0 = arith.constant 0 : i32
    %c0_i32_1 = arith.constant 0 : i32
    return %c0_i32, %c0_i32_0 : i32, i32
  }
  func.func @transform_9(%arg0: i32) -> (i32, i32) {
    %c0_i32 = arith.constant 0 : i32
    %c0_i32_0 = arith.constant 0 : i32
    %c0_i32_1 = arith.constant 0 : i32
    return %c0_i32, %c0_i32_0 : i32, i32
  }
  func.func @transform_10(%arg0: i32) -> (i32, i32) {
    %c0_i32 = arith.constant 0 : i32
    %c0_i32_0 = arith.constant 0 : i32
    %c0_i32_1 = arith.constant 0 : i32
    return %c0_i32, %c0_i32_0 : i32, i32
  }
  func.func @transform_11(%arg0: i32) -> (i32, i32) {
    %c0_i32 = arith.constant 0 : i32
    %c0_i32_0 = arith.constant 0 : i32
    %c0_i32_1 = arith.constant 0 : i32
    return %c0_i32, %c0_i32_0 : i32, i32
  }
  func.func @transform_12(%arg0: i32) -> (i32, i32) {
    %c0_i32 = arith.constant 0 : i32
    %c0_i32_0 = arith.constant 0 : i32
    %c0_i32_1 = arith.constant 0 : i32
    return %c0_i32, %c0_i32_0 : i32, i32
  }
  func.func @transform_13(%arg0: i32) -> (i32, i32) {
    %c0_i32 = arith.constant 0 : i32
    %c0_i32_0 = arith.constant 0 : i32
    %c0_i32_1 = arith.constant 0 : i32
    return %c0_i32, %c0_i32_0 : i32, i32
  }
  func.func @transform_14(%arg0: i32) -> (i32, i32) {
    %c0_i32 = arith.constant 0 : i32
    %c0_i32_0 = arith.constant 0 : i32
    %c0_i32_1 = arith.constant 0 : i32
    return %c0_i32, %c0_i32_0 : i32, i32
  }
  func.func @transform_15(%arg0: i32) -> (i32, i32, i32) {
    %c0_i32 = arith.constant 0 : i32
    %c0_i32_0 = arith.constant 0 : i32
    %c0_i32_1 = arith.constant 0 : i32
    return %arg0, %c0_i32, %c0_i32_0 : i32, i32, i32
  }
}

</mosaic_0001>

<llo_original>
// kernel: tpu_custom_call.1
$region0: #{tpu_custom_call.1}
  #allocation0 [shape = 'u32[]', space=smem, size = 0x4, offset = 0x4, fixed_abs, tag = 'smem constant byte address 0x4 - core index']
  #allocation1 [shape = 'u32[144,128]{1,0:T(1,128)}', space=vmem, size = 0x12000, scoped, tag = 'internal scratch']
  %s0 = inlined_call_operand.hbm [shape: bf16[2,24,256], index: 0, kind: input, shape index: {}]
  %s1 = inlined_call_operand.hbm [shape: bf16[256,256], index: 1, kind: input, shape index: {}]
  %s2 = inlined_call_operand.hbm [shape: bf16[128,128], index: 2, kind: input, shape index: {}]
  %s3 = inlined_call_operand.vmem [shape: f32[1,128], index: 3, kind: input, shape index: {}]
  %s4 = inlined_call_operand.hbm [shape: bf16[384,256], index: 4, kind: input, shape index: {}]
  %s5 = inlined_call_operand.hbm [shape: f32[1,256], index: 5, kind: input, shape index: {}]
  %s6 = inlined_call_operand.hbm [shape: bf16[256,512], index: 6, kind: input, shape index: {}]
  %s7 = inlined_call_operand.vmem [shape: f32[1,512], index: 7, kind: input, shape index: {}]
  %s8 = inlined_call_operand.hbm [shape: bf16[512,256], index: 8, kind: input, shape index: {}]
  %s9 = inlined_call_operand.hbm [shape: f32[1,256], index: 9, kind: input, shape index: {}]
  %s10 = inlined_call_operand.vmem [shape: bf16[256,128], index: 10, kind: input, shape index: {}]
  %s11 = inlined_call_operand.vmem [shape: f32[1,128], index: 11, kind: input, shape index: {}]
  %s12 = inlined_call_operand.vmem [shape: bf16[128,64], index: 12, kind: input, shape index: {}]
  %s13 = inlined_call_operand.vmem [shape: f32[1,64], index: 13, kind: input, shape index: {}]
  %s14 = inlined_call_operand.vmem [shape: f32[1,64], index: 14, kind: input, shape index: {}]
  %s15 = inlined_call_operand.vmem [shape: f32[2,1,1], index: 15, kind: output, shape index: {}]
  %s16 = sld [smem:[#allocation0]]
  $region125: #{tpu_custom_call.1} parent=0
    _
  %s18 = ssub.s32 1, %s16
  %s19 = scalar_select 0, %s18, %s16
  $region1: #{tpu_custom_call.1} parent=0
    #allocation2 [shape = 'u8[24576]{0}', space=vmem, size = 0x6000, scoped, tag = 'input window, operand 0']
    #allocation3 [shape = 's32[2]{0}', space=sflag, size = 0x8, scoped, tag = 'scoped memory for tpu_custom_call.1']
    #allocation4 [shape = 'u8[131072]{0}', space=vmem, size = 0x20000, scoped, tag = 'input window, operand 1, single buffered']
    #allocation5 [shape = 's32[1]{0}', space=sflag, size = 0x4, scoped, tag = 'scoped memory for tpu_custom_call.1']
    #allocation6 [shape = 'u8[32768]{0}', space=vmem, size = 0x8000, scoped, tag = 'input window, operand 2, single buffered']
    #allocation7 [shape = 'u8[196608]{0}', space=vmem, size = 0x30000, scoped, tag = 'input window, operand 4, single buffered']
    #allocation8 [shape = 's32[1]{0}', space=sflag, size = 0x4, scoped, tag = 'scoped memory for tpu_custom_call.1']
    #allocation9 [shape = 'u8[1024]{0}', space=vmem, size = 0x400, scoped, tag = 'input window, operand 5, single buffered']
    #allocation10 [shape = 'u8[262144]{0}', space=vmem, size = 0x40000, scoped, tag = 'input window, operand 6, single buffered']
    #allocation11 [shape = 's32[1]{0}', space=sflag, size = 0x4, scoped, tag = 'scoped memory for tpu_custom_call.1']
    #allocation12 [shape = 'u8[262144]{0}', space=vmem, size = 0x40000, scoped, tag = 'input window, operand 8, single buffered']
    #allocation13 [shape = 'u8[1024]{0}', space=vmem, size = 0x400, scoped, tag = 'input window, operand 9, single buffered']
    #allocation14 [shape = 's32[1]{0}', space=sflag, size = 0x4, scoped, tag = 'scoped memory for tpu_custom_call.1']
    %20 = vsyncpa [#allocation3], 0
    %s21 = scalar_lea.sflag [#allocation3], 1
    %22 = vsyncpa %s21, 0
    %23 = vsyncpa [#allocation5], 0
    %24 = vsyncpa [#allocation8], 0
    %25 = vsyncpa [#allocation11], 0
    %26 = vsyncpa [#allocation14], 0
    loop: start=0, step=1, limit=4
    $region2: #{tpu_custom_call.1} parent=1 // loop_pre_header
      _
    $region3: #{tpu_custom_call.1} parent=1 // loop_header
      %s28 = sphi 0, %s32
      %p29 = scmp.ge.s32.totalorder %s28, 4
      %s38 = sphi 0, %s40
      %s41 = sphi 0, %s38
      %s42 = sphi 0, %s41
      %s58 = sphi 0, %s42
      %s62 = sphi 0, %s62
      %s64 = sphi 0, %s62
      %s65 = sphi 0, %s64
      %s79 = sphi 0, %s65
      %s83 = sphi 0, %s83
      %s85 = sphi 0, %s83
      %s86 = sphi 0, %s85
      %s100 = sphi 0, %s86
      %s104 = sphi 0, %s104
      %s106 = sphi 0, %s104
      %s107 = sphi 0, %s106
      %s121 = sphi 0, %s107
      %s125 = sphi 0, %s125
      %s127 = sphi 0, %s125
      %s128 = sphi 0, %s127
      %s142 = sphi 0, %s128
      %s146 = sphi 0, %s146
      %s148 = sphi 0, %s146
      %s149 = sphi 0, %s148
      %s163 = sphi 0, %s149
      %s167 = sphi 0, %s167
      %s169 = sphi 0, %s167
      %s170 = sphi 0, %s169
      %s184 = sphi 0, %s170
      %s188 = sphi 0, %s188
      %s190 = sphi 0, %s188
      %s191 = sphi 0, %s190
      %s205 = sphi 0, %s191
      %s209 = sphi 0, %s209
      %s211 = sphi 0, %s209
      %s212 = sphi 0, %s211
      %s226 = sphi 0, %s212
      %s230 = sphi 0, %s230
      %s232 = sphi 0, %s230
      %s233 = sphi 0, %s232
      %s247 = sphi 0, %s233
      %s251 = sphi 0, %s251
      %s253 = sphi 0, %s251
      %s254 = sphi 0, %s253
      %s268 = sphi 0, %s254
      %s272 = sphi 0, %s272
      %s274 = sphi 0, %s272
      %s275 = sphi 0, %s274
      %s289 = sphi 0, %s275
      %s293 = sphi 0, %s293
      %s295 = sphi 0, %s293
      %s296 = sphi 0, %s295
      %s310 = sphi 0, %s296
      %s314 = sphi 0, %s314
      %s316 = sphi 0, %s314
      %s317 = sphi 0, %s316
      %s331 = sphi 0, %s317
      %s335 = sphi 0, %s335
      %s337 = sphi 0, %s335
      %s338 = sphi 0, %s337
      %s352 = sphi 0, %s338
      %s358 = sphi 0, %s360
      %s361 = sphi 0, %s358
      %s362 = sphi 0, %s361
      %s378 = sphi 0, %s362
    $region4: #{tpu_custom_call.1} parent=1 // loop_header_branch
      %31 = sbr.rel (%p29) target = $region8
    $region5: #{tpu_custom_call.1} parent=1 // loop_body
      %s33 = ssub.s32 %s28, 1
      %s34 = ssub.s32 %s28, 2
      %s35 = sadd.s32 %s28, 1
      %s36 = ssub.s32 %s28, %s35
      %p37 = scmp.eq.s32.totalorder %s36, 0
      %s39 = sadd.s32 %s38, 1
      %s40 = scalar_select %p37, %s38, %s39
      %p43 = pneg %p37
      %p44 = scmp.eq.s32.totalorder %s28, 1
      %p45 = por %p43, %p44
      %p46 = scmp.ne.s32.totalorder %s38, %s41
      %p47 = scmp.eq.s32.totalorder %s28, 0
      %p48 = por %p46, %p47
      %p49 = scmp.ne.s32.totalorder %s38, %s41
      %p50 = scmp.eq.s32.totalorder %s33, 1
      %p51 = por %p49, %p50
      %p52 = scmp.ne.s32.totalorder %s41, %s42
      %p53 = scmp.eq.s32.totalorder %s33, 0
      %p54 = por %p52, %p53
      %p55 = scmp.ne.s32.totalorder %s41, %s42
      %p56 = scmp.eq.s32.totalorder %s34, 1
      %p57 = por %p55, %p56
      %p59 = scmp.ne.s32.totalorder %s42, %s58
      %p60 = scmp.eq.s32.totalorder %s34, 0
      %p61 = por %p59, %p60
      %s63 = sadd.s32 %s62, 1
      %p66 = scmp.eq.s32.totalorder %s28, 1
      %p67 = scmp.ne.s32.totalorder %s62, %s64
      %p68 = scmp.eq.s32.totalorder %s28, 0
      %p69 = por %p67, %p68
      %p70 = scmp.ne.s32.totalorder %s62, %s64
      %p71 = scmp.eq.s32.totalorder %s33, 1
      %p72 = por %p70, %p71
      %p73 = scmp.ne.s32.totalorder %s64, %s65
      %p74 = scmp.eq.s32.totalorder %s33, 0
      %p75 = por %p73, %p74
      %p76 = scmp.ne.s32.totalorder %s64, %s65
      %p77 = scmp.eq.s32.totalorder %s34, 1
      %p78 = por %p76, %p77
      %p80 = scmp.ne.s32.totalorder %s65, %s79
      %p81 = scmp.eq.s32.totalorder %s34, 0
      %p82 = por %p80, %p81
      %s84 = sadd.s32 %s83, 1
      %p87 = scmp.eq.s32.totalorder %s28, 1
      %p88 = scmp.ne.s32.totalorder %s83, %s85
      %p89 = scmp.eq.s32.totalorder %s28, 0
      %p90 = por %p88, %p89
      %p91 = scmp.ne.s32.totalorder %s83, %s85
      %p92 = scmp.eq.s32.totalorder %s33, 1
      %p93 = por %p91, %p92
      %p94 = scmp.ne.s32.totalorder %s85, %s86
      %p95 = scmp.eq.s32.totalorder %s33, 0
      %p96 = por %p94, %p95
      %p97 = scmp.ne.s32.totalorder %s85, %s86
      %p98 = scmp.eq.s32.totalorder %s34, 1
      %p99 = por %p97, %p98
      %p101 = scmp.ne.s32.totalorder %s86, %s100
      %p102 = scmp.eq.s32.totalorder %s34, 0
      %p103 = por %p101, %p102
      %s105 = sadd.s32 %s104, 1
      %p108 = scmp.eq.s32.totalorder %s28, 1
      %p109 = scmp.ne.s32.totalorder %s104, %s106
      %p110 = scmp.eq.s32.totalorder %s28, 0
      %p111 = por %p109, %p110
      %p112 = scmp.ne.s32.totalorder %s104, %s106
      %p113 = scmp.eq.s32.totalorder %s33, 1
      %p114 = por %p112, %p113
      %p115 = scmp.ne.s32.totalorder %s106, %s107
      %p116 = scmp.eq.s32.totalorder %s33, 0
      %p117 = por %p115, %p116
      %p118 = scmp.ne.s32.totalorder %s106, %s107
      %p119 = scmp.eq.s32.totalorder %s34, 1
      %p120 = por %p118, %p119
      %p122 = scmp.ne.s32.totalorder %s107, %s121
      %p123 = scmp.eq.s32.totalorder %s34, 0
      %p124 = por %p122, %p123
      %s126 = sadd.s32 %s125, 1
      %p129 = scmp.eq.s32.totalorder %s28, 1
      %p130 = scmp.ne.s32.totalorder %s125, %s127
      %p131 = scmp.eq.s32.totalorder %s28, 0
      %p132 = por %p130, %p131
      %p133 = scmp.ne.s32.totalorder %s125, %s127
      %p134 = scmp.eq.s32.totalorder %s33, 1
      %p135 = por %p133, %p134
      %p136 = scmp.ne.s32.totalorder %s127, %s128
      %p137 = scmp.eq.s32.totalorder %s33, 0
      %p138 = por %p136, %p137
      %p139 = scmp.ne.s32.totalorder %s127, %s128
      %p140 = scmp.eq.s32.totalorder %s34, 1
      %p141 = por %p139, %p140
      %p143 = scmp.ne.s32.totalorder %s128, %s142
      %p144 = scmp.eq.s32.totalorder %s34, 0
      %p145 = por %p143, %p144
      %s147 = sadd.s32 %s146, 1
      %p150 = scmp.eq.s32.totalorder %s28, 1
      %p151 = scmp.ne.s32.totalorder %s146, %s148
      %p152 = scmp.eq.s32.totalorder %s28, 0
      %p153 = por %p151, %p152
      %p154 = scmp.ne.s32.totalorder %s146, %s148
      %p155 = scmp.eq.s32.totalorder %s33, 1
      %p156 = por %p154, %p155
      %p157 = scmp.ne.s32.totalorder %s148, %s149
      %p158 = scmp.eq.s32.totalorder %s33, 0
      %p159 = por %p157, %p158
      %p160 = scmp.ne.s32.totalorder %s148, %s149
      %p161 = scmp.eq.s32.totalorder %s34, 1
      %p162 = por %p160, %p161
      %p164 = scmp.ne.s32.totalorder %s149, %s163
      %p165 = scmp.eq.s32.totalorder %s34, 0
      %p166 = por %p164, %p165
      %s168 = sadd.s32 %s167, 1
      %p171 = scmp.eq.s32.totalorder %s28, 1
      %p172 = scmp.ne.s32.totalorder %s167, %s169
      %p173 = scmp.eq.s32.totalorder %s28, 0
      %p174 = por %p172, %p173
      %p175 = scmp.ne.s32.totalorder %s167, %s169
      %p176 = scmp.eq.s32.totalorder %s33, 1
      %p177 = por %p175, %p176
      %p178 = scmp.ne.s32.totalorder %s169, %s170
      %p179 = scmp.eq.s32.totalorder %s33, 0
      %p180 = por %p178, %p179
      %p181 = scmp.ne.s32.totalorder %s169, %s170
      %p182 = scmp.eq.s32.totalorder %s34, 1
      %p183 = por %p181, %p182
      %p185 = scmp.ne.s32.totalorder %s170, %s184
      %p186 = scmp.eq.s32.totalorder %s34, 0
      %p187 = por %p185, %p186
      %s189 = sadd.s32 %s188, 1
      %p192 = scmp.eq.s32.totalorder %s28, 1
      %p193 = scmp.ne.s32.totalorder %s188, %s190
      %p194 = scmp.eq.s32.totalorder %s28, 0
      %p195 = por %p193, %p194
      %p196 = scmp.ne.s32.totalorder %s188, %s190
      %p197 = scmp.eq.s32.totalorder %s33, 1
      %p198 = por %p196, %p197
      %p199 = scmp.ne.s32.totalorder %s190, %s191
      %p200 = scmp.eq.s32.totalorder %s33, 0
      %p201 = por %p199, %p200
      %p202 = scmp.ne.s32.totalorder %s190, %s191
      %p203 = scmp.eq.s32.totalorder %s34, 1
      %p204 = por %p202, %p203
      %p206 = scmp.ne.s32.totalorder %s191, %s205
      %p207 = scmp.eq.s32.totalorder %s34, 0
      %p208 = por %p206, %p207
      %s210 = sadd.s32 %s209, 1
      %p213 = scmp.eq.s32.totalorder %s28, 1
      %p214 = scmp.ne.s32.totalorder %s209, %s211
      %p215 = scmp.eq.s32.totalorder %s28, 0
      %p216 = por %p214, %p215
      %p217 = scmp.ne.s32.totalorder %s209, %s211
      %p218 = scmp.eq.s32.totalorder %s33, 1
      %p219 = por %p217, %p218
      %p220 = scmp.ne.s32.totalorder %s211, %s212
      %p221 = scmp.eq.s32.totalorder %s33, 0
      %p222 = por %p220, %p221
      %p223 = scmp.ne.s32.totalorder %s211, %s212
      %p224 = scmp.eq.s32.totalorder %s34, 1
      %p225 = por %p223, %p224
      %p227 = scmp.ne.s32.totalorder %s212, %s226
      %p228 = scmp.eq.s32.totalorder %s34, 0
      %p229 = por %p227, %p228
      %s231 = sadd.s32 %s230, 1
      %p234 = scmp.eq.s32.totalorder %s28, 1
      %p235 = scmp.ne.s32.totalorder %s230, %s232
      %p236 = scmp.eq.s32.totalorder %s28, 0
      %p237 = por %p235, %p236
      %p238 = scmp.ne.s32.totalorder %s230, %s232
      %p239 = scmp.eq.s32.totalorder %s33, 1
      %p240 = por %p238, %p239
      %p241 = scmp.ne.s32.totalorder %s232, %s233
      %p242 = scmp.eq.s32.totalorder %s33, 0
      %p243 = por %p241, %p242
      %p244 = scmp.ne.s32.totalorder %s232, %s233
      %p245 = scmp.eq.s32.totalorder %s34, 1
      %p246 = por %p244, %p245
      %p248 = scmp.ne.s32.totalorder %s233, %s247
      %p249 = scmp.eq.s32.totalorder %s34, 0
      %p250 = por %p248, %p249
      %s252 = sadd.s32 %s251, 1
      %p255 = scmp.eq.s32.totalorder %s28, 1
      %p256 = scmp.ne.s32.totalorder %s251, %s253
      %p257 = scmp.eq.s32.totalorder %s28, 0
      %p258 = por %p256, %p257
      %p259 = scmp.ne.s32.totalorder %s251, %s253
      %p260 = scmp.eq.s32.totalorder %s33, 1
      %p261 = por %p259, %p260
      %p262 = scmp.ne.s32.totalorder %s253, %s254
      %p263 = scmp.eq.s32.totalorder %s33, 0
      %p264 = por %p262, %p263
      %p265 = scmp.ne.s32.totalorder %s253, %s254
      %p266 = scmp.eq.s32.totalorder %s34, 1
      %p267 = por %p265, %p266
      %p269 = scmp.ne.s32.totalorder %s254, %s268
      %p270 = scmp.eq.s32.totalorder %s34, 0
      %p271 = por %p269, %p270
      %s273 = sadd.s32 %s272, 1
      %p276 = scmp.eq.s32.totalorder %s28, 1
      %p277 = scmp.ne.s32.totalorder %s272, %s274
      %p278 = scmp.eq.s32.totalorder %s28, 0
      %p279 = por %p277, %p278
      %p280 = scmp.ne.s32.totalorder %s272, %s274
      %p281 = scmp.eq.s32.totalorder %s33, 1
      %p282 = por %p280, %p281
      %p283 = scmp.ne.s32.totalorder %s274, %s275
      %p284 = scmp.eq.s32.totalorder %s33, 0
      %p285 = por %p283, %p284
      %p286 = scmp.ne.s32.totalorder %s274, %s275
      %p287 = scmp.eq.s32.totalorder %s34, 1
      %p288 = por %p286, %p287
      %p290 = scmp.ne.s32.totalorder %s275, %s289
      %p291 = scmp.eq.s32.totalorder %s34, 0
      %p292 = por %p290, %p291
      %s294 = sadd.s32 %s293, 1
      %p297 = scmp.eq.s32.totalorder %s28, 1
      %p298 = scmp.ne.s32.totalorder %s293, %s295
      %p299 = scmp.eq.s32.totalorder %s28, 0
      %p300 = por %p298, %p299
      %p301 = scmp.ne.s32.totalorder %s293, %s295
      %p302 = scmp.eq.s32.totalorder %s33, 1
      %p303 = por %p301, %p302
      %p304 = scmp.ne.s32.totalorder %s295, %s296
      %p305 = scmp.eq.s32.totalorder %s33, 0
      %p306 = por %p304, %p305
      %p307 = scmp.ne.s32.totalorder %s295, %s296
      %p308 = scmp.eq.s32.totalorder %s34, 1
      %p309 = por %p307, %p308
      %p311 = scmp.ne.s32.totalorder %s296, %s310
      %p312 = scmp.eq.s32.totalorder %s34, 0
      %p313 = por %p311, %p312
      %s315 = sadd.s32 %s314, 1
      %p318 = scmp.eq.s32.totalorder %s28, 1
      %p319 = scmp.ne.s32.totalorder %s314, %s316
      %p320 = scmp.eq.s32.totalorder %s28, 0
      %p321 = por %p319, %p320
      %p322 = scmp.ne.s32.totalorder %s314, %s316
      %p323 = scmp.eq.s32.totalorder %s33, 1
      %p324 = por %p322, %p323
      %p325 = scmp.ne.s32.totalorder %s316, %s317
      %p326 = scmp.eq.s32.totalorder %s33, 0
      %p327 = por %p325, %p326
      %p328 = scmp.ne.s32.totalorder %s316, %s317
      %p329 = scmp.eq.s32.totalorder %s34, 1
      %p330 = por %p328, %p329
      %p332 = scmp.ne.s32.totalorder %s317, %s331
      %p333 = scmp.eq.s32.totalorder %s34, 0
      %p334 = por %p332, %p333
      %s336 = sadd.s32 %s335, 1
      %p339 = scmp.eq.s32.totalorder %s28, 1
      %p340 = scmp.ne.s32.totalorder %s335, %s337
      %p341 = scmp.eq.s32.totalorder %s28, 0
      %p342 = por %p340, %p341
      %p343 = scmp.ne.s32.totalorder %s335, %s337
      %p344 = scmp.eq.s32.totalorder %s33, 1
      %p345 = por %p343, %p344
      %p346 = scmp.ne.s32.totalorder %s337, %s338
      %p347 = scmp.eq.s32.totalorder %s33, 0
      %p348 = por %p346, %p347
      %p349 = scmp.ne.s32.totalorder %s337, %s338
      %p350 = scmp.eq.s32.totalorder %s34, 1
      %p351 = por %p349, %p350
      %p353 = scmp.ne.s32.totalorder %s338, %s352
      %p354 = scmp.eq.s32.totalorder %s34, 0
      %p355 = por %p353, %p354
      %s356 = ssub.s32 %s28, %s35
      %p357 = scmp.eq.s32.totalorder %s356, 0
      %s359 = sadd.s32 %s358, 1
      %s360 = scalar_select %p357, %s358, %s359
      %p363 = pneg %p357
      %p364 = scmp.eq.s32.totalorder %s28, 1
      %p365 = por %p363, %p364
      %p366 = scmp.ne.s32.totalorder %s358, %s361
      %p367 = scmp.eq.s32.totalorder %s28, 0
      %p368 = por %p366, %p367
      %p369 = scmp.ne.s32.totalorder %s358, %s361
      %p370 = scmp.eq.s32.totalorder %s33, 1
      %p371 = por %p369, %p370
      %p372 = scmp.ne.s32.totalorder %s361, %s362
      %p373 = scmp.eq.s32.totalorder %s33, 0
      %p374 = por %p372, %p373
      %p375 = scmp.ne.s32.totalorder %s361, %s362
      %p376 = scmp.eq.s32.totalorder %s34, 1
      %p377 = por %p375, %p376
      %p379 = scmp.ne.s32.totalorder %s362, %s378
      %p380 = scmp.eq.s32.totalorder %s34, 0
      %p381 = por %p379, %p380
      %p382 = scmp.le.s32.totalorder 1, %s28
      %p383 = scmp.lt.s32.totalorder %s28, 3
      %p384 = pnand %p382, %p383
      %p385 = pneg %p384
      // Predicated region
      $region9: #{tpu_custom_call.1} parent=5 // pred_check
        _
      $region10: #{tpu_custom_call.1} parent=5 // pred_check_branch
        %387 = sbr.rel (%p384) target = $region12
      $region11: #{tpu_custom_call.1} parent=5 // pred_region
        %s388 = ssub.s32 %s28, 1
        // Predicated region
        $region13: #{tpu_custom_call.1} parent=11 // pred_check
          %p389 = pneg %p75
        $region14: #{tpu_custom_call.1} parent=11 // pred_check_branch
          %391 = sbr.rel (%p389) target = $region16
        $region15: #{tpu_custom_call.1} parent=11 // pred_region
          %s393 = ssub.s32 4096, 4096
          %394 = vsyncadd [#allocation5], %s393
          %s395 = sshll.u32 [#allocation4], 4
          %s396 = int_to_ptr.vmem [resolvable:$true] %s395
          %401 = dma.hbm_to_vmem [thread:$0]  %s1, 4096, %s396, [#allocation5], 128, 128, 8
        $region16: #{tpu_custom_call.1} parent=11 // pred_fallthru
          _
        // Predicated region
        $region17: #{tpu_custom_call.1} parent=11 // pred_check
          %p402 = pneg %p96
        $region18: #{tpu_custom_call.1} parent=11 // pred_check_branch
          %404 = sbr.rel (%p402) target = $region20
        $region19: #{tpu_custom_call.1} parent=11 // pred_region
          %s406 = ssub.s32 1024, 1024
          %407 = vsyncadd [#allocation5], %s406
          %s408 = sshll.u32 [#allocation6], 4
          %s409 = int_to_ptr.vmem [resolvable:$true] %s408
          %414 = dma.hbm_to_vmem [thread:$0]  %s2, 1024, %s409, [#allocation5], 64, 64, 4
        $region20: #{tpu_custom_call.1} parent=11 // pred_fallthru
          _
        // Predicated region
        $region21: #{tpu_custom_call.1} parent=11 // pred_check
          %p415 = pneg %p117
        $region22: #{tpu_custom_call.1} parent=11 // pred_check_branch
          %417 = sbr.rel (%p415) target = $region24
        $region23: #{tpu_custom_call.1} parent=11 // pred_region
          _
        $region24: #{tpu_custom_call.1} parent=11 // pred_fallthru
          _
        // Predicated region
        $region25: #{tpu_custom_call.1} parent=11 // pred_check
          %p418 = pneg %p138
        $region26: #{tpu_custom_call.1} parent=11 // pred_check_branch
          %420 = sbr.rel (%p418) target = $region28
        $region27: #{tpu_custom_call.1} parent=11 // pred_region
          %s422 = ssub.s32 6144, 6144
          %423 = vsyncadd [#allocation8], %s422
          %s424 = sshll.u32 [#allocation7], 4
          %s425 = int_to_ptr.vmem [resolvable:$true] %s424
          %430 = dma.hbm_to_vmem [thread:$0]  %s4, 6144, %s425, [#allocation8], 128, 128, 8
        $region28: #{tpu_custom_call.1} parent=11 // pred_fallthru
          _
        // Predicated region
        $region29: #{tpu_custom_call.1} parent=11 // pred_check
          %p431 = pneg %p159
        $region30: #{tpu_custom_call.1} parent=11 // pred_check_branch
          %433 = sbr.rel (%p431) target = $region32
        $region31: #{tpu_custom_call.1} parent=11 // pred_region
          %s435 = ssub.s32 32, 32
          %436 = vsyncadd [#allocation8], %s435
          %s438 = sshll.u32 [#allocation9], 4
          %s439 = int_to_ptr.vmem [resolvable:$true] %s438
          %441 = dma.hbm_to_vmem [thread:$0]  %s5, 32, %s439, [#allocation8]
        $region32: #{tpu_custom_call.1} parent=11 // pred_fallthru
          _
        // Predicated region
        $region33: #{tpu_custom_call.1} parent=11 // pred_check
          %p442 = pneg %p180
        $region34: #{tpu_custom_call.1} parent=11 // pred_check_branch
          %444 = sbr.rel (%p442) target = $region36
        $region35: #{tpu_custom_call.1} parent=11 // pred_region
          %s446 = ssub.s32 8192, 8192
          %447 = vsyncadd [#allocation11], %s446
          %s448 = sshll.u32 [#allocation10], 4
          %s449 = int_to_ptr.vmem [resolvable:$true] %s448
          %454 = dma.hbm_to_vmem [thread:$0]  %s6, 8192, %s449, [#allocation11], 256, 256, 16
        $region36: #{tpu_custom_call.1} parent=11 // pred_fallthru
          _
        // Predicated region
        $region37: #{tpu_custom_call.1} parent=11 // pred_check
          %p455 = pneg %p201
        $region38: #{tpu_custom_call.1} parent=11 // pred_check_branch
          %457 = sbr.rel (%p455) target = $region40
        $region39: #{tpu_custom_call.1} parent=11 // pred_region
          _
        $region40: #{tpu_custom_call.1} parent=11 // pred_fallthru
          _
        // Predicated region
        $region41: #{tpu_custom_call.1} parent=11 // pred_check
          %p458 = pneg %p222
        $region42: #{tpu_custom_call.1} parent=11 // pred_check_branch
          %460 = sbr.rel (%p458) target = $region44
        $region43: #{tpu_custom_call.1} parent=11 // pred_region
          %s462 = ssub.s32 8192, 8192
          %463 = vsyncadd [#allocation11], %s462
          %s464 = sshll.u32 [#allocation12], 4
          %s465 = int_to_ptr.vmem [resolvable:$true] %s464
          %470 = dma.hbm_to_vmem [thread:$0]  %s8, 8192, %s465, [#allocation11], 128, 128, 8
        $region44: #{tpu_custom_call.1} parent=11 // pred_fallthru
          _
        // Predicated region
        $region45: #{tpu_custom_call.1} parent=11 // pred_check
          %p471 = pneg %p243
        $region46: #{tpu_custom_call.1} parent=11 // pred_check_branch
          %473 = sbr.rel (%p471) target = $region48
        $region47: #{tpu_custom_call.1} parent=11 // pred_region
          %s475 = ssub.s32 32, 32
          %476 = vsyncadd [#allocation14], %s475
          %s478 = sshll.u32 [#allocation13], 4
          %s479 = int_to_ptr.vmem [resolvable:$true] %s478
          %481 = dma.hbm_to_vmem [thread:$0]  %s9, 32, %s479, [#allocation14]
        $region48: #{tpu_custom_call.1} parent=11 // pred_fallthru
          _
        // Predicated region
        $region49: #{tpu_custom_call.1} parent=11 // pred_check
          %p482 = pneg %p264
        $region50: #{tpu_custom_call.1} parent=11 // pred_check_branch
          %484 = sbr.rel (%p482) target = $region52
        $region51: #{tpu_custom_call.1} parent=11 // pred_region
          _
        $region52: #{tpu_custom_call.1} parent=11 // pred_fallthru
          _
        // Predicated region
        $region53: #{tpu_custom_call.1} parent=11 // pred_check
          %p485 = pneg %p285
        $region54: #{tpu_custom_call.1} parent=11 // pred_check_branch
          %487 = sbr.rel (%p485) target = $region56
        $region55: #{tpu_custom_call.1} parent=11 // pred_region
          _
        $region56: #{tpu_custom_call.1} parent=11 // pred_fallthru
          _
        // Predicated region
        $region57: #{tpu_custom_call.1} parent=11 // pred_check
          %p488 = pneg %p306
        $region58: #{tpu_custom_call.1} parent=11 // pred_check_branch
          %490 = sbr.rel (%p488) target = $region60
        $region59: #{tpu_custom_call.1} parent=11 // pred_region
          _
        $region60: #{tpu_custom_call.1} parent=11 // pred_fallthru
          _
        // Predicated region
        $region61: #{tpu_custom_call.1} parent=11 // pred_check
          %p491 = pneg %p327
        $region62: #{tpu_custom_call.1} parent=11 // pred_check_branch
          %493 = sbr.rel (%p491) target = $region64
        $region63: #{tpu_custom_call.1} parent=11 // pred_region
          _
        $region64: #{tpu_custom_call.1} parent=11 // pred_fallthru
          _
        // Predicated region
        $region65: #{tpu_custom_call.1} parent=11 // pred_check
          %p494 = pneg %p348
        $region66: #{tpu_custom_call.1} parent=11 // pred_check_branch
          %496 = sbr.rel (%p494) target = $region68
        $region67: #{tpu_custom_call.1} parent=11 // pred_region
          _
        $region68: #{tpu_custom_call.1} parent=11 // pred_fallthru
          _
      $region12: #{tpu_custom_call.1} parent=5 // pred_fallthru
        _
      %p497 = scmp.lt.s32.totalorder %s28, 2
      // Predicated region
      $region69: #{tpu_custom_call.1} parent=5 // pred_check
        %p498 = pneg %p497
      $region70: #{tpu_custom_call.1} parent=5 // pred_check_branch
        %500 = sbr.rel (%p498) target = $region72
      $region71: #{tpu_custom_call.1} parent=5 // pred_region
        // Predicated region
        $region73: #{tpu_custom_call.1} parent=71 // pred_check
          %p501 = pneg %p48
        $region74: #{tpu_custom_call.1} parent=71 // pred_check_branch
          %503 = sbr.rel (%p501) target = $region76
        $region75: #{tpu_custom_call.1} parent=71 // pred_region
          %s504 = sand.u32 %s38, 1
          %s505 = scalar_lea.sflag [#allocation3], %s504
          %s506 = sand.u32 %s38, 1
          %s507 = smul.addr %s506, 24
          %s508 = scalar_lea.vmem [#allocation2], %s507
          %s510 = ssub.s32 384, 384
          %511 = vsyncadd %s505, %s510
          %s512 = smul.addr %s28, 6
          %s513 = smul.addr %s512, 64
          %s514 = scalar_lea.hbm %s0, %s513
          %s515 = sshll.u32 %s508, 4
          %s516 = int_to_ptr.vmem [resolvable:$true] %s515
          %521 = dma.hbm_to_vmem [thread:$0]  %s514, 384, %s516, %s505, 128, 128, 8
        $region76: #{tpu_custom_call.1} parent=71 // pred_fallthru
          _
      $region72: #{tpu_custom_call.1} parent=5 // pred_fallthru
        _
      %p522 = scmp.le.s32.totalorder 1, %s28
      %p523 = scmp.lt.s32.totalorder %s28, 3
      %p524 = pnand %p522, %p523
      %p525 = pneg %p524
      // Predicated region
      $region77: #{tpu_custom_call.1} parent=5 // pred_check
        _
      $region78: #{tpu_custom_call.1} parent=5 // pred_check_branch
        %527 = sbr.rel (%p524) target = $region80
      $region79: #{tpu_custom_call.1} parent=5 // pred_region
        %s528 = ssub.s32 %s28, 1
        %s529 = sand.u32 %s41, 1
        %s530 = scalar_lea.sflag [#allocation3], %s529
        %s531 = sand.u32 %s41, 1
        %s532 = smul.addr %s531, 24
        %s533 = scalar_lea.vmem [#allocation2], %s532
        // Predicated region
        $region81: #{tpu_custom_call.1} parent=79 // pred_check
          %p534 = pneg %p54
        $region82: #{tpu_custom_call.1} parent=79 // pred_check_branch
          %536 = sbr.rel (%p534) target = $region84
        $region83: #{tpu_custom_call.1} parent=79 // pred_region
          %537 = dma.done %s530, 384
        $region84: #{tpu_custom_call.1} parent=79 // pred_fallthru
          _
        // Predicated region
        $region85: #{tpu_custom_call.1} parent=79 // pred_check
          %p538 = pneg %p75
        $region86: #{tpu_custom_call.1} parent=79 // pred_check_branch
          %540 = sbr.rel (%p538) target = $region88
        $region87: #{tpu_custom_call.1} parent=79 // pred_region
          %541 = dma.done [#allocation5], 4096
        $region88: #{tpu_custom_call.1} parent=79 // pred_fallthru
          _
        // Predicated region
        $region89: #{tpu_custom_call.1} parent=79 // pred_check
          %p542 = pneg %p96
        $region90: #{tpu_custom_call.1} parent=79 // pred_check_branch
          %544 = sbr.rel (%p542) target = $region92
        $region91: #{tpu_custom_call.1} parent=79 // pred_region
          %545 = dma.done [#allocation5], 1024
        $region92: #{tpu_custom_call.1} parent=79 // pred_fallthru
          _
        // Predicated region
        $region93: #{tpu_custom_call.1} parent=79 // pred_check
          %p546 = pneg %p138
        $region94: #{tpu_custom_call.1} parent=79 // pred_check_branch
          %548 = sbr.rel (%p546) target = $region96
        $region95: #{tpu_custom_call.1} parent=79 // pred_region
          %549 = dma.done [#allocation8], 6144
        $region96: #{tpu_custom_call.1} parent=79 // pred_fallthru
          _
        // Predicated region
        $region97: #{tpu_custom_call.1} parent=79 // pred_check
          %p550 = pneg %p159
        $region98: #{tpu_custom_call.1} parent=79 // pred_check_branch
          %552 = sbr.rel (%p550) target = $region100
        $region99: #{tpu_custom_call.1} parent=79 // pred_region
          %553 = dma.done [#allocation8], 32
        $region100: #{tpu_custom_call.1} parent=79 // pred_fallthru
          _
        // Predicated region
        $region101: #{tpu_custom_call.1} parent=79 // pred_check
          %p554 = pneg %p180
        $region102: #{tpu_custom_call.1} parent=79 // pred_check_branch
          %556 = sbr.rel (%p554) target = $region104
        $region103: #{tpu_custom_call.1} parent=79 // pred_region
          %557 = dma.done [#allocation11], 8192
        $region104: #{tpu_custom_call.1} parent=79 // pred_fallthru
          _
        // Predicated region
        $region105: #{tpu_custom_call.1} parent=79 // pred_check
          %p558 = pneg %p222
        $region106: #{tpu_custom_call.1} parent=79 // pred_check_branch
          %560 = sbr.rel (%p558) target = $region108
        $region107: #{tpu_custom_call.1} parent=79 // pred_region
          %561 = dma.done [#allocation11], 8192
        $region108: #{tpu_custom_call.1} parent=79 // pred_fallthru
          _
        // Predicated region
        $region109: #{tpu_custom_call.1} parent=79 // pred_check
          %p562 = pneg %p243
        $region110: #{tpu_custom_call.1} parent=79 // pred_check_branch
          %564 = sbr.rel (%p562) target = $region112
        $region111: #{tpu_custom_call.1} parent=79 // pred_region
          %565 = dma.done [#allocation14], 32
        $region112: #{tpu_custom_call.1} parent=79 // pred_fallthru
          _
        %s566 = sand.u32 %s41, 1
        %s567 = scalar_lea.sflag [#allocation3], %s566
        %s568 = sand.u32 %s41, 1
        %s569 = smul.addr %s568, 24
        %s570 = scalar_lea.vmem [#allocation2], %s569
        %p571 = pneg %p54
        %p572 = pneg %p51
        %p573 = pneg %p75
        %p574 = pneg %p72
        %p575 = pneg %p96
        %p576 = pneg %p93
        %p577 = pneg %p117
        %p578 = pneg %p114
        %p579 = pneg %p138
        %p580 = pneg %p135
        %p581 = pneg %p159
        %p582 = pneg %p156
        %p583 = pneg %p180
        %p584 = pneg %p177
        %p585 = pneg %p201
        %p586 = pneg %p198
        %p587 = pneg %p222
        %p588 = pneg %p219
        %p589 = pneg %p243
        %p590 = pneg %p240
        %p591 = pneg %p264
        %p592 = pneg %p261
        %p593 = pneg %p285
        %p594 = pneg %p282
        %p595 = pneg %p306
        %p596 = pneg %p303
        %p597 = pneg %p327
        %p598 = pneg %p324
        %p599 = pneg %p348
        %p600 = pneg %p345
        %p601 = pneg %p374
        %p602 = pneg %p371
        %p603 = scmp.lt.s32.totalorder %s33, 1
        %s604 = scalar_select %p603, %s33, 1
        %s605 = scalar_lea.vmem %s15, %s604
        %p606 = scmp.lt.s32.totalorder %s33, 1
        %s607 = scalar_select %p606, %s33, 1
        %s608 = scalar_lea.vmem %s15, %s607
        %v610 = vld [vmem:[%s533] sm:$0xff]
        %v611 = vld [vmem:[%s533 + $0x8] sm:$0xff]
        %v612 = vld [vmem:[%s533 + $0x10] sm:$0xff]
        %v613 = vld [vmem:[#allocation4] sm:$0xff]
        %v614 = vld [vmem:[#allocation4 + $0x8] sm:$0xff]
        %v615 = vld [vmem:[#allocation4 + $0x10] sm:$0xff]
        %v616 = vld [vmem:[#allocation4 + $0x18] sm:$0xff]
        %v617 = vld [vmem:[#allocation4 + $0x20] sm:$0xff]
        %v618 = vld [vmem:[#allocation4 + $0x28] sm:$0xff]
        %v619 = vld [vmem:[#allocation4 + $0x30] sm:$0xff]
        %v620 = vld [vmem:[#allocation4 + $0x38] sm:$0xff]
        %v621 = vld [vmem:[#allocation4 + $0x40] sm:$0xff]
        %v622 = vld [vmem:[#allocation4 + $0x48] sm:$0xff]
        %v623 = vld [vmem:[#allocation4 + $0x50] sm:$0xff]
        %v624 = vld [vmem:[#allocation4 + $0x58] sm:$0xff]
        %v625 = vld [vmem:[#allocation4 + $0x60] sm:$0xff]
        %v626 = vld [vmem:[#allocation4 + $0x68] sm:$0xff]
        %v627 = vld [vmem:[#allocation4 + $0x70] sm:$0xff]
        %v628 = vld [vmem:[#allocation4 + $0x78] sm:$0xff]
        %v629 = vld [vmem:[#allocation4 + $0x80] sm:$0xff]
        %v630 = vld [vmem:[#allocation4 + $0x88] sm:$0xff]
        %v631 = vld [vmem:[#allocation4 + $0x90] sm:$0xff]
        %v632 = vld [vmem:[#allocation4 + $0x98] sm:$0xff]
        %v633 = vld [vmem:[#allocation4 + $0xa0] sm:$0xff]
        %v634 = vld [vmem:[#allocation4 + $0xa8] sm:$0xff]
        %v635 = vld [vmem:[#allocation4 + $0xb0] sm:$0xff]
        %v636 = vld [vmem:[#allocation4 + $0xb8] sm:$0xff]
        %v637 = vld [vmem:[#allocation4 + $0xc0] sm:$0xff]
        %v638 = vld [vmem:[#allocation4 + $0xc8] sm:$0xff]
        %v639 = vld [vmem:[#allocation4 + $0xd0] sm:$0xff]
        %v640 = vld [vmem:[#allocation4 + $0xd8] sm:$0xff]
        %v641 = vld [vmem:[#allocation4 + $0xe0] sm:$0xff]
        %v642 = vld [vmem:[#allocation4 + $0xe8] sm:$0xff]
        %v643 = vld [vmem:[#allocation4 + $0xf0] sm:$0xff]
        %v644 = vld [vmem:[#allocation4 + $0xf8] sm:$0xff]
        %v648 = vunpack.c.l.b16 %v610
        %v649 = vunpack.c.h.b16 %v610
        %v650 = vunpack.c.l.b16 %v611
        %v651 = vunpack.c.h.b16 %v611
        %v652 = vunpack.c.l.b16 %v612
        %v653 = vunpack.c.h.b16 %v612
        %v654 = vpack.c.b16 %v650, %v648
        %v655 = vpack.c.b16 %v651, %v649
        %v656 = vpack.c.b16 %v652, %v652
        %v657 = vpack.c.b16 %v653, %v653
        %v694 = vunpack.c.l.b16 %v613
        %v695 = vunpack.c.h.b16 %v613
        %v696 = vunpack.c.l.b16 %v614
        %v697 = vunpack.c.h.b16 %v614
        %v698 = vunpack.c.l.b16 %v615
        %v699 = vunpack.c.h.b16 %v615
        %v700 = vunpack.c.l.b16 %v616
        %v701 = vunpack.c.h.b16 %v616
        %v702 = vunpack.c.l.b16 %v617
        %v703 = vunpack.c.h.b16 %v617
        %v704 = vunpack.c.l.b16 %v618
        %v705 = vunpack.c.h.b16 %v618
        %v706 = vunpack.c.l.b16 %v619
        %v707 = vunpack.c.h.b16 %v619
        %v708 = vunpack.c.l.b16 %v620
        %v709 = vunpack.c.h.b16 %v620
        %v710 = vunpack.c.l.b16 %v621
        %v711 = vunpack.c.h.b16 %v621
        %v712 = vunpack.c.l.b16 %v622
        %v713 = vunpack.c.h.b16 %v622
        %v714 = vunpack.c.l.b16 %v623
        %v715 = vunpack.c.h.b16 %v623
        %v716 = vunpack.c.l.b16 %v624
        %v717 = vunpack.c.h.b16 %v624
        %v718 = vunpack.c.l.b16 %v625
        %v719 = vunpack.c.h.b16 %v625
        %v720 = vunpack.c.l.b16 %v626
        %v721 = vunpack.c.h.b16 %v626
        %v722 = vunpack.c.l.b16 %v627
        %v723 = vunpack.c.h.b16 %v627
        %v724 = vunpack.c.l.b16 %v628
        %v725 = vunpack.c.h.b16 %v628
        %v726 = vunpack.c.l.b16 %v629
        %v727 = vunpack.c.h.b16 %v629
        %v728 = vunpack.c.l.b16 %v630
        %v729 = vunpack.c.h.b16 %v630
        %v730 = vunpack.c.l.b16 %v631
        %v731 = vunpack.c.h.b16 %v631
        %v732 = vunpack.c.l.b16 %v632
        %v733 = vunpack.c.h.b16 %v632
        %v734 = vunpack.c.l.b16 %v633
        %v735 = vunpack.c.h.b16 %v633
        %v736 = vunpack.c.l.b16 %v634
        %v737 = vunpack.c.h.b16 %v634
        %v738 = vunpack.c.l.b16 %v635
        %v739 = vunpack.c.h.b16 %v635
        %v740 = vunpack.c.l.b16 %v636
        %v741 = vunpack.c.h.b16 %v636
        %v742 = vunpack.c.l.b16 %v637
        %v743 = vunpack.c.h.b16 %v637
        %v744 = vunpack.c.l.b16 %v638
        %v745 = vunpack.c.h.b16 %v638
        %v746 = vunpack.c.l.b16 %v639
        %v747 = vunpack.c.h.b16 %v639
        %v748 = vunpack.c.l.b16 %v640
        %v749 = vunpack.c.h.b16 %v640
        %v750 = vunpack.c.l.b16 %v641
        %v751 = vunpack.c.h.b16 %v641
        %v752 = vunpack.c.l.b16 %v642
        %v753 = vunpack.c.h.b16 %v642
        %v754 = vunpack.c.l.b16 %v643
        %v755 = vunpack.c.h.b16 %v643
        %v756 = vunpack.c.l.b16 %v644
        %v757 = vunpack.c.h.b16 %v644
        %v758 = vpack.c.b16 %v696, %v694
        %v759 = vpack.c.b16 %v697, %v695
        %v760 = vpack.c.b16 %v700, %v698
        %v761 = vpack.c.b16 %v701, %v699
        %v762 = vpack.c.b16 %v704, %v702
        %v763 = vpack.c.b16 %v705, %v703
        %v764 = vpack.c.b16 %v708, %v706
        %v765 = vpack.c.b16 %v709, %v707
        %v766 = vpack.c.b16 %v712, %v710
        %v767 = vpack.c.b16 %v713, %v711
        %v768 = vpack.c.b16 %v716, %v714
        %v769 = vpack.c.b16 %v717, %v715
        %v770 = vpack.c.b16 %v720, %v718
        %v771 = vpack.c.b16 %v721, %v719
        %v772 = vpack.c.b16 %v724, %v722
        %v773 = vpack.c.b16 %v725, %v723
        %v774 = vpack.c.b16 %v728, %v726
        %v775 = vpack.c.b16 %v729, %v727
        %v776 = vpack.c.b16 %v732, %v730
        %v777 = vpack.c.b16 %v733, %v731
        %v778 = vpack.c.b16 %v736, %v734
        %v779 = vpack.c.b16 %v737, %v735
        %v780 = vpack.c.b16 %v740, %v738
        %v781 = vpack.c.b16 %v741, %v739
        %v782 = vpack.c.b16 %v744, %v742
        %v783 = vpack.c.b16 %v745, %v743
        %v784 = vpack.c.b16 %v748, %v746
        %v785 = vpack.c.b16 %v749, %v747
        %v786 = vpack.c.b16 %v752, %v750
        %v787 = vpack.c.b16 %v753, %v751
        %v788 = vpack.c.b16 %v756, %v754
        %v789 = vpack.c.b16 %v757, %v755
        %822 = vmatprep.subr.bf16.mxu0 %v759
        %823 = vmatpush1.bf16.msra.mxu0 %v758
        %824 = vmatprep.subr.bf16.mxu0 %v761
        %825 = vmatpush1.bf16.msra.mxu0 %v760
        %826 = vmatprep.subr.bf16.mxu0 %v763
        %827 = vmatpush1.bf16.msra.mxu0 %v762
        %828 = vmatprep.subr.bf16.mxu0 %v765
        %829 = vmatpush1.bf16.msra.mxu0 %v764
        %830 = vmatprep.subr.bf16.mxu0 %v767
        %831 = vmatpush1.bf16.msra.mxu0 %v766
        %832 = vmatprep.subr.bf16.mxu0 %v769
        %833 = vmatpush1.bf16.msra.mxu0 %v768
        %834 = vmatprep.subr.bf16.mxu0 %v771
        %835 = vmatpush1.bf16.msra.mxu0 %v770
        %836 = vmatprep.subr.bf16.mxu0 %v773
        %837 = vmatpush1.bf16.msra.mxu0 %v772
        %838 = vmatprep.subr.bf16.mxu0 %v775
        %839 = vmatpush1.bf16.msra.mxu0 %v774
        %840 = vmatprep.subr.bf16.mxu0 %v777
        %841 = vmatpush1.bf16.msra.mxu0 %v776
        %842 = vmatprep.subr.bf16.mxu0 %v779
        %843 = vmatpush1.bf16.msra.mxu0 %v778
        %844 = vmatprep.subr.bf16.mxu0 %v781
        %845 = vmatpush1.bf16.msra.mxu0 %v780
        %846 = vmatprep.subr.bf16.mxu0 %v783
        %847 = vmatpush1.bf16.msra.mxu0 %v782
        %848 = vmatprep.subr.bf16.mxu0 %v785
        %849 = vmatpush1.bf16.msra.mxu0 %v784
        %850 = vmatprep.subr.bf16.mxu0 %v787
        %851 = vmatpush1.bf16.msra.mxu0 %v786
        %852 = vmatprep.subr.bf16.mxu0 %v789
        %853 = vmatpush1.bf16.msra.mxu0 %v788
        %854 = vmatprep.mubr.bf16.mxu0 %v655
        %855 = vmatmul.mubr.bf16.gmra.mrb[0].mxu0 %v654
        %v856 = vpop.f32.mrb[0].mxu0
        %v857 = vadd.f32 0.0, %v856
        %v858 = vpop.f32.mrb[0].mxu0
        %v859 = vadd.f32 0.0, %v858
        %v860 = vpop.f32.mrb[0].mxu0
        %v861 = vadd.f32 0.0, %v860
        %v862 = vpop.f32.mrb[0].mxu0
        %v863 = vadd.f32 0.0, %v862
        %864 = vmatprep.mubr.bf16.mxu0 %v657
        %865 = vmatmul.mubr.bf16.gmra.mrb[0].mxu0 %v656
        %v866 = vpop.f32.mrb[0].mxu0
        %v867 = vadd.f32 0.0, %v866
        %v868 = vpop.f32.mrb[0].mxu0
        %v869 = vadd.f32 0.0, %v868
        %v870 = vpop.f32.mrb[0].mxu0
        %v871 = vpop.f32.mrb[0].mxu0
        %872 = vdwg.mxu0
        %v873 = vmul.f32 %v857, %v857
        %v874 = vmul.f32 %v861, %v861
        %v875 = vmul.f32 %v867, %v867
        %v876 = vmul.f32 %v859, %v859
        %v877 = vmul.f32 %v863, %v863
        %v878 = vmul.f32 %v869, %v869
        %v879 = vadd.f32 %v873, %v876
        %v880 = vadd.f32 %v874, %v877
        %v881 = vadd.f32 %v875, %v878
        %v882 = vadd.f32 %v879, 1e-20
        %v883 = vadd.f32 %v880, 1e-20
        %v884 = vadd.f32 %v881, 1e-20
        %v885 = vlog2.pop %v882
        %v886 = vmul.f32 %v885, 0.6931472
        %v887 = vlog2.pop %v883
        %v888 = vmul.f32 %v887, 0.6931472
        %v889 = vlog2.pop %v884
        %v890 = vmul.f32 %v889, 0.6931472
        %v891 = vmul.f32 %v886, 0.5
        %v892 = vmul.f32 %v888, 0.5
        %v893 = vmul.f32 %v890, 0.5
        %v894 = vpack.c.bf16 %v892, %v891
        %v895 = vpack.c.bf16 %v893, %v893
        %v896 = vld [vmem:[#allocation6] sm:$0xf]
        %v897 = vld [vmem:[#allocation6 + $0x4] sm:$0xf]
        %v898 = vld [vmem:[#allocation6 + $0x8] sm:$0xf]
        %v899 = vld [vmem:[#allocation6 + $0xc] sm:$0xf]
        %v900 = vld [vmem:[#allocation6 + $0x10] sm:$0xf]
        %v901 = vld [vmem:[#allocation6 + $0x14] sm:$0xf]
        %v902 = vld [vmem:[#allocation6 + $0x18] sm:$0xf]
        %v903 = vld [vmem:[#allocation6 + $0x1c] sm:$0xf]
        %v904 = vld [vmem:[#allocation6 + $0x20] sm:$0xf]
        %v905 = vld [vmem:[#allocation6 + $0x24] sm:$0xf]
        %v906 = vld [vmem:[#allocation6 + $0x28] sm:$0xf]
        %v907 = vld [vmem:[#allocation6 + $0x2c] sm:$0xf]
        %v908 = vld [vmem:[#allocation6 + $0x30] sm:$0xf]
        %v909 = vld [vmem:[#allocation6 + $0x34] sm:$0xf]
        %v910 = vld [vmem:[#allocation6 + $0x38] sm:$0xf]
        %v911 = vld [vmem:[#allocation6 + $0x3c] sm:$0xf]
        %v912 = vld [vmem:[%s3] sm:$0x1]
        %v914 = vlaneseq
        %v915 = vshrl.u32 %v914, 7
        %v916 = vsub.s32 0, %v915
        %v917 = vrot.slane %v912, %v916
        %v935 = vunpack.c.l.b16 %v896
        %v936 = vunpack.c.l.b16 %v897
        %v937 = vunpack.c.l.b16 %v898
        %v938 = vunpack.c.l.b16 %v899
        %v939 = vunpack.c.l.b16 %v900
        %v940 = vunpack.c.l.b16 %v901
        %v941 = vunpack.c.l.b16 %v902
        %v942 = vunpack.c.l.b16 %v903
        %v943 = vunpack.c.l.b16 %v904
        %v944 = vunpack.c.l.b16 %v905
        %v945 = vunpack.c.l.b16 %v906
        %v946 = vunpack.c.l.b16 %v907
        %v947 = vunpack.c.l.b16 %v908
        %v948 = vunpack.c.l.b16 %v909
        %v949 = vunpack.c.l.b16 %v910
        %v950 = vunpack.c.l.b16 %v911
        %v951 = vpack.c.b16 %v936, %v935
        %v952 = vpack.c.b16 %v938, %v937
        %v953 = vpack.c.b16 %v940, %v939
        %v954 = vpack.c.b16 %v942, %v941
        %v955 = vpack.c.b16 %v944, %v943
        %v956 = vpack.c.b16 %v946, %v945
        %v957 = vpack.c.b16 %v948, %v947
        %v958 = vpack.c.b16 %v950, %v949
        %967 = vmatprep.subr.bf16.mxu0 0
        %968 = vmatpush1.bf16.msra.mxu0 %v951
        %969 = vmatprep.subr.bf16.mxu0 0
        %970 = vmatpush1.bf16.msra.mxu0 %v952
        %971 = vmatprep.subr.bf16.mxu0 0
        %972 = vmatpush1.bf16.msra.mxu0 %v953
        %973 = vmatprep.subr.bf16.mxu0 0
        %974 = vmatpush1.bf16.msra.mxu0 %v954
        %975 = vmatprep.subr.bf16.mxu0 0
        %976 = vmatpush1.bf16.msra.mxu0 %v955
        %977 = vmatprep.subr.bf16.mxu0 0
        %978 = vmatpush1.bf16.msra.mxu0 %v956
        %979 = vmatprep.subr.bf16.mxu0 0
        %980 = vmatpush1.bf16.msra.mxu0 %v957
        %981 = vmatprep.subr.bf16.mxu0 0
        %982 = vmatpush1.bf16.msra.mxu0 %v958
        %983 = vmatprep.subr.bf16.mxu0 0
        %984 = vmatpush1.bf16.msra.mxu0 0
        %985 = vmatprep.subr.bf16.mxu0 0
        %986 = vmatpush1.bf16.msra.mxu0 0
        %987 = vmatprep.subr.bf16.mxu0 0
        %988 = vmatpush1.bf16.msra.mxu0 0
        %989 = vmatprep.subr.bf16.mxu0 0
        %990 = vmatpush1.bf16.msra.mxu0 0
        %991 = vmatprep.subr.bf16.mxu0 0
        %992 = vmatpush1.bf16.msra.mxu0 0
        %993 = vmatprep.subr.bf16.mxu0 0
        %994 = vmatpush1.bf16.msra.mxu0 0
        %995 = vmatprep.subr.bf16.mxu0 0
        %996 = vmatpush1.bf16.msra.mxu0 0
        %997 = vmatprep.subr.bf16.mxu0 0
        %998 = vmatpush1.bf16.msra.mxu0 0
        %999 = vmatprep.mubr.bf16.mxu0 0
        %1000 = vmatmul.mubr.bf16.gmra.mrb[0].mxu0 %v894
        %v1001 = vpop.f32.mrb[0].mxu0
        %v1002 = vadd.f32 %v917, %v1001
        %v1003 = vpop.f32.mrb[0].mxu0
        %v1004 = vpop.f32.mrb[0].mxu0
        %v1005 = vadd.f32 %v917, %v1004
        %v1006 = vpop.f32.mrb[0].mxu0
        %1007 = vmatprep.mubr.bf16.mxu0 0
        %1008 = vmatmul.mubr.bf16.gmra.mrb[0].mxu0 %v895
        %v1009 = vpop.f32.mrb[0].mxu0
        %v1010 = vadd.f32 %v917, %v1009
        %v1011 = vpop.f32.mrb[0].mxu0
        %v1012 = vpop.f32.mrb[0].mxu0
        %v1013 = vpop.f32.mrb[0].mxu0
        %1014 = vdwg.mxu0
        %v1015 = vmax.f32 %v1002, 0.0
        %v1016 = vmax.f32 %v1005, 0.0
        %v1017 = vmax.f32 %v1010, 0.0
        %v1018 = vpack.c.bf16 %v1016, %v1015
        %v1019 = vpack.c.bf16 %v1017, %v1017
        %vm1023 = vcmask 1046528
        %v1024 = vrot.slane %v1015, 1
        %v1025 = vrot.slane %v1016, 1
        %v1026 = vsel %vm1023, %v1024, %v1025
        %v1027 = vrot.slane %v1017, 1
        %v1028 = vsel %vm1023, %v1025, %v1027
        %v1033 = vsel %vm1023, %v1027, %v1024
        %v1034 = vpack.c.bf16 %v1028, %v1026
        %v1035 = vpack.c.bf16 %v1033, %v1033
        %vm1036 = vcmask 1045504
        %v1037 = vrot.slane %v1015, 2
        %v1038 = vrot.slane %v1016, 2
        %v1039 = vsel %vm1036, %v1037, %v1038
        %v1040 = vrot.slane %v1017, 2
        %v1041 = vsel %vm1036, %v1038, %v1040
        %v1046 = vsel %vm1036, %v1040, %v1037
        %v1047 = vpack.c.bf16 %v1041, %v1039
        %v1048 = vpack.c.bf16 %v1046, %v1046
        %v1049 = vld [vmem:[#allocation7] sm:$0xff]
        %v1050 = vld [vmem:[#allocation7 + $0x8] sm:$0xff]
        %v1051 = vld [vmem:[#allocation7 + $0x10] sm:$0xff]
        %v1052 = vld [vmem:[#allocation7 + $0x18] sm:$0xff]
        %v1053 = vld [vmem:[#allocation7 + $0x20] sm:$0xff]
        %v1054 = vld [vmem:[#allocation7 + $0x28] sm:$0xff]
        %v1055 = vld [vmem:[#allocation7 + $0x30] sm:$0xff]
        %v1056 = vld [vmem:[#allocation7 + $0x38] sm:$0xff]
        %v1057 = vld [vmem:[#allocation7 + $0x40] sm:$0xff]
        %v1058 = vld [vmem:[#allocation7 + $0x48] sm:$0xff]
        %v1059 = vld [vmem:[#allocation7 + $0x50] sm:$0xff]
        %v1060 = vld [vmem:[#allocation7 + $0x58] sm:$0xff]
        %v1061 = vld [vmem:[#allocation7 + $0x60] sm:$0xff]
        %v1062 = vld [vmem:[#allocation7 + $0x68] sm:$0xff]
        %v1063 = vld [vmem:[#allocation7 + $0x70] sm:$0xff]
        %v1064 = vld [vmem:[#allocation7 + $0x78] sm:$0xff]
        %v1065 = vld [vmem:[#allocation7 + $0x80] sm:$0xff]
        %v1066 = vld [vmem:[#allocation7 + $0x88] sm:$0xff]
        %v1067 = vld [vmem:[#allocation7 + $0x90] sm:$0xff]
        %v1068 = vld [vmem:[#allocation7 + $0x98] sm:$0xff]
        %v1069 = vld [vmem:[#allocation7 + $0xa0] sm:$0xff]
        %v1070 = vld [vmem:[#allocation7 + $0xa8] sm:$0xff]
        %v1071 = vld [vmem:[#allocation7 + $0xb0] sm:$0xff]
        %v1072 = vld [vmem:[#allocation7 + $0xb8] sm:$0xff]
        %v1073 = vld [vmem:[#allocation7 + $0xc0] sm:$0xff]
        %v1074 = vld [vmem:[#allocation7 + $0xc8] sm:$0xff]
        %v1075 = vld [vmem:[#allocation7 + $0xd0] sm:$0xff]
        %v1076 = vld [vmem:[#allocation7 + $0xd8] sm:$0xff]
        %v1077 = vld [vmem:[#allocation7 + $0xe0] sm:$0xff]
        %v1078 = vld [vmem:[#allocation7 + $0xe8] sm:$0xff]
        %v1079 = vld [vmem:[#allocation7 + $0xf0] sm:$0xff]
        %v1080 = vld [vmem:[#allocation7 + $0xf8] sm:$0xff]
        %v1081 = vld [vmem:[#allocation7 + $0x100] sm:$0xff]
        %v1082 = vld [vmem:[#allocation7 + $0x108] sm:$0xff]
        %v1083 = vld [vmem:[#allocation7 + $0x110] sm:$0xff]
        %v1084 = vld [vmem:[#allocation7 + $0x118] sm:$0xff]
        %v1085 = vld [vmem:[#allocation7 + $0x120] sm:$0xff]
        %v1086 = vld [vmem:[#allocation7 + $0x128] sm:$0xff]
        %v1087 = vld [vmem:[#allocation7 + $0x130] sm:$0xff]
        %v1088 = vld [vmem:[#allocation7 + $0x138] sm:$0xff]
        %v1089 = vld [vmem:[#allocation7 + $0x140] sm:$0xff]
        %v1090 = vld [vmem:[#allocation7 + $0x148] sm:$0xff]
        %v1091 = vld [vmem:[#allocation7 + $0x150] sm:$0xff]
        %v1092 = vld [vmem:[#allocation7 + $0x158] sm:$0xff]
        %v1093 = vld [vmem:[#allocation7 + $0x160] sm:$0xff]
        %v1094 = vld [vmem:[#allocation7 + $0x168] sm:$0xff]
        %v1095 = vld [vmem:[#allocation7 + $0x170] sm:$0xff]
        %v1096 = vld [vmem:[#allocation7 + $0x178] sm:$0xff]
        %v1097 = vld [vmem:[#allocation9] sm:$0x3]
        %v1099 = vlaneseq
        %v1100 = vshrl.u32 %v1099, 7
        %v1101 = vsub.s32 0, %v1100
        %v1102 = vrot.slane %v1097, %v1101
        %v1103 = vlaneseq
        %v1104 = vshrl.u32 %v1103, 7
        %v1105 = vsub.s32 1, %v1104
        %v1106 = vrot.slane %v1097, %v1105
        %v1157 = vunpack.c.l.b16 %v1049
        %v1158 = vunpack.c.h.b16 %v1049
        %v1159 = vunpack.c.l.b16 %v1050
        %v1160 = vunpack.c.h.b16 %v1050
        %v1161 = vunpack.c.l.b16 %v1051
        %v1162 = vunpack.c.h.b16 %v1051
        %v1163 = vunpack.c.l.b16 %v1052
        %v1164 = vunpack.c.h.b16 %v1052
        %v1165 = vunpack.c.l.b16 %v1053
        %v1166 = vunpack.c.h.b16 %v1053
        %v1167 = vunpack.c.l.b16 %v1054
        %v1168 = vunpack.c.h.b16 %v1054
        %v1169 = vunpack.c.l.b16 %v1055
        %v1170 = vunpack.c.h.b16 %v1055
        %v1171 = vunpack.c.l.b16 %v1056
        %v1172 = vunpack.c.h.b16 %v1056
        %v1173 = vunpack.c.l.b16 %v1057
        %v1174 = vunpack.c.h.b16 %v1057
        %v1175 = vunpack.c.l.b16 %v1058
        %v1176 = vunpack.c.h.b16 %v1058
        %v1177 = vunpack.c.l.b16 %v1059
        %v1178 = vunpack.c.h.b16 %v1059
        %v1179 = vunpack.c.l.b16 %v1060
        %v1180 = vunpack.c.h.b16 %v1060
        %v1181 = vunpack.c.l.b16 %v1061
        %v1182 = vunpack.c.h.b16 %v1061
        %v1183 = vunpack.c.l.b16 %v1062
        %v1184 = vunpack.c.h.b16 %v1062
        %v1185 = vunpack.c.l.b16 %v1063
        %v1186 = vunpack.c.h.b16 %v1063
        %v1187 = vunpack.c.l.b16 %v1064
        %v1188 = vunpack.c.h.b16 %v1064
        %v1189 = vunpack.c.l.b16 %v1065
        %v1190 = vunpack.c.h.b16 %v1065
        %v1191 = vunpack.c.l.b16 %v1066
        %v1192 = vunpack.c.h.b16 %v1066
        %v1193 = vunpack.c.l.b16 %v1067
        %v1194 = vunpack.c.h.b16 %v1067
        %v1195 = vunpack.c.l.b16 %v1068
        %v1196 = vunpack.c.h.b16 %v1068
        %v1197 = vunpack.c.l.b16 %v1069
        %v1198 = vunpack.c.h.b16 %v1069
        %v1199 = vunpack.c.l.b16 %v1070
        %v1200 = vunpack.c.h.b16 %v1070
        %v1201 = vunpack.c.l.b16 %v1071
        %v1202 = vunpack.c.h.b16 %v1071
        %v1203 = vunpack.c.l.b16 %v1072
        %v1204 = vunpack.c.h.b16 %v1072
        %v1205 = vunpack.c.l.b16 %v1073
        %v1206 = vunpack.c.h.b16 %v1073
        %v1207 = vunpack.c.l.b16 %v1074
        %v1208 = vunpack.c.h.b16 %v1074
        %v1209 = vunpack.c.l.b16 %v1075
        %v1210 = vunpack.c.h.b16 %v1075
        %v1211 = vunpack.c.l.b16 %v1076
        %v1212 = vunpack.c.h.b16 %v1076
        %v1213 = vunpack.c.l.b16 %v1077
        %v1214 = vunpack.c.h.b16 %v1077
        %v1215 = vunpack.c.l.b16 %v1078
        %v1216 = vunpack.c.h.b16 %v1078
        %v1217 = vunpack.c.l.b16 %v1079
        %v1218 = vunpack.c.h.b16 %v1079
        %v1219 = vunpack.c.l.b16 %v1080
        %v1220 = vunpack.c.h.b16 %v1080
        %v1221 = vunpack.c.l.b16 %v1081
        %v1222 = vunpack.c.h.b16 %v1081
        %v1223 = vunpack.c.l.b16 %v1082
        %v1224 = vunpack.c.h.b16 %v1082
        %v1225 = vunpack.c.l.b16 %v1083
        %v1226 = vunpack.c.h.b16 %v1083
        %v1227 = vunpack.c.l.b16 %v1084
        %v1228 = vunpack.c.h.b16 %v1084
        %v1229 = vunpack.c.l.b16 %v1085
        %v1230 = vunpack.c.h.b16 %v1085
        %v1231 = vunpack.c.l.b16 %v1086
        %v1232 = vunpack.c.h.b16 %v1086
        %v1233 = vunpack.c.l.b16 %v1087
        %v1234 = vunpack.c.h.b16 %v1087
        %v1235 = vunpack.c.l.b16 %v1088
        %v1236 = vunpack.c.h.b16 %v1088
        %v1237 = vunpack.c.l.b16 %v1089
        %v1238 = vunpack.c.h.b16 %v1089
        %v1239 = vunpack.c.l.b16 %v1090
        %v1240 = vunpack.c.h.b16 %v1090
        %v1241 = vunpack.c.l.b16 %v1091
        %v1242 = vunpack.c.h.b16 %v1091
        %v1243 = vunpack.c.l.b16 %v1092
        %v1244 = vunpack.c.h.b16 %v1092
        %v1245 = vunpack.c.l.b16 %v1093
        %v1246 = vunpack.c.h.b16 %v1093
        %v1247 = vunpack.c.l.b16 %v1094
        %v1248 = vunpack.c.h.b16 %v1094
        %v1249 = vunpack.c.l.b16 %v1095
        %v1250 = vunpack.c.h.b16 %v1095
        %v1251 = vunpack.c.l.b16 %v1096
        %v1252 = vunpack.c.h.b16 %v1096
        %v1253 = vpack.c.b16 %v1159, %v1157
        %v1254 = vpack.c.b16 %v1160, %v1158
        %v1255 = vpack.c.b16 %v1163, %v1161
        %v1256 = vpack.c.b16 %v1164, %v1162
        %v1257 = vpack.c.b16 %v1167, %v1165
        %v1258 = vpack.c.b16 %v1168, %v1166
        %v1259 = vpack.c.b16 %v1171, %v1169
        %v1260 = vpack.c.b16 %v1172, %v1170
        %v1261 = vpack.c.b16 %v1175, %v1173
        %v1262 = vpack.c.b16 %v1176, %v1174
        %v1263 = vpack.c.b16 %v1179, %v1177
        %v1264 = vpack.c.b16 %v1180, %v1178
        %v1265 = vpack.c.b16 %v1183, %v1181
        %v1266 = vpack.c.b16 %v1184, %v1182
        %v1267 = vpack.c.b16 %v1187, %v1185
        %v1268 = vpack.c.b16 %v1188, %v1186
        %v1269 = vpack.c.b16 %v1191, %v1189
        %v1270 = vpack.c.b16 %v1192, %v1190
        %v1271 = vpack.c.b16 %v1195, %v1193
        %v1272 = vpack.c.b16 %v1196, %v1194
        %v1273 = vpack.c.b16 %v1199, %v1197
        %v1274 = vpack.c.b16 %v1200, %v1198
        %v1275 = vpack.c.b16 %v1203, %v1201
        %v1276 = vpack.c.b16 %v1204, %v1202
        %v1277 = vpack.c.b16 %v1207, %v1205
        %v1278 = vpack.c.b16 %v1208, %v1206
        %v1279 = vpack.c.b16 %v1211, %v1209
        %v1280 = vpack.c.b16 %v1212, %v1210
        %v1281 = vpack.c.b16 %v1215, %v1213
        %v1282 = vpack.c.b16 %v1216, %v1214
        %v1283 = vpack.c.b16 %v1219, %v1217
        %v1284 = vpack.c.b16 %v1220, %v1218
        %v1285 = vpack.c.b16 %v1223, %v1221
        %v1286 = vpack.c.b16 %v1224, %v1222
        %v1287 = vpack.c.b16 %v1227, %v1225
        %v1288 = vpack.c.b16 %v1228, %v1226
        %v1289 = vpack.c.b16 %v1231, %v1229
        %v1290 = vpack.c.b16 %v1232, %v1230
        %v1291 = vpack.c.b16 %v1235, %v1233
        %v1292 = vpack.c.b16 %v1236, %v1234
        %v1293 = vpack.c.b16 %v1239, %v1237
        %v1294 = vpack.c.b16 %v1240, %v1238
        %v1295 = vpack.c.b16 %v1243, %v1241
        %v1296 = vpack.c.b16 %v1244, %v1242
        %v1297 = vpack.c.b16 %v1247, %v1245
        %v1298 = vpack.c.b16 %v1248, %v1246
        %v1299 = vpack.c.b16 %v1251, %v1249
        %v1300 = vpack.c.b16 %v1252, %v1250
        %1349 = vmatprep.subr.bf16.mxu0 %v1254
        %1350 = vmatpush1.bf16.msra.mxu0 %v1253
        %1351 = vmatprep.subr.bf16.mxu0 %v1256
        %1352 = vmatpush1.bf16.msra.mxu0 %v1255
        %1353 = vmatprep.subr.bf16.mxu0 %v1258
        %1354 = vmatpush1.bf16.msra.mxu0 %v1257
        %1355 = vmatprep.subr.bf16.mxu0 %v1260
        %1356 = vmatpush1.bf16.msra.mxu0 %v1259
        %1357 = vmatprep.subr.bf16.mxu0 %v1262
        %1358 = vmatpush1.bf16.msra.mxu0 %v1261
        %1359 = vmatprep.subr.bf16.mxu0 %v1264
        %1360 = vmatpush1.bf16.msra.mxu0 %v1263
        %1361 = vmatprep.subr.bf16.mxu0 %v1266
        %1362 = vmatpush1.bf16.msra.mxu0 %v1265
        %1363 = vmatprep.subr.bf16.mxu0 %v1268
        %1364 = vmatpush1.bf16.msra.mxu0 %v1267
        %1365 = vmatprep.subr.bf16.mxu0 %v1270
        %1366 = vmatpush1.bf16.msra.mxu0 %v1269
        %1367 = vmatprep.subr.bf16.mxu0 %v1272
        %1368 = vmatpush1.bf16.msra.mxu0 %v1271
        %1369 = vmatprep.subr.bf16.mxu0 %v1274
        %1370 = vmatpush1.bf16.msra.mxu0 %v1273
        %1371 = vmatprep.subr.bf16.mxu0 %v1276
        %1372 = vmatpush1.bf16.msra.mxu0 %v1275
        %1373 = vmatprep.subr.bf16.mxu0 %v1278
        %1374 = vmatpush1.bf16.msra.mxu0 %v1277
        %1375 = vmatprep.subr.bf16.mxu0 %v1280
        %1376 = vmatpush1.bf16.msra.mxu0 %v1279
        %1377 = vmatprep.subr.bf16.mxu0 %v1282
        %1378 = vmatpush1.bf16.msra.mxu0 %v1281
        %1379 = vmatprep.subr.bf16.mxu0 %v1284
        %1380 = vmatpush1.bf16.msra.mxu0 %v1283
        %1381 = vmatprep.mubr.bf16.mxu0 %v1034
        %1382 = vmatmul.mubr.bf16.gmra.mrb[0].mxu0 %v1018
        %v1383 = vpop.f32.mrb[0].mxu0
        %v1384 = vadd.f32 %v1102, %v1383
        %v1385 = vpop.f32.mrb[0].mxu0
        %v1386 = vadd.f32 %v1106, %v1385
        %v1387 = vpop.f32.mrb[0].mxu0
        %v1388 = vadd.f32 %v1102, %v1387
        %v1389 = vpop.f32.mrb[0].mxu0
        %v1390 = vadd.f32 %v1106, %v1389
        %1391 = vmatprep.mubr.bf16.mxu0 %v1035
        %1392 = vmatmul.mubr.bf16.gmra.mrb[0].mxu0 %v1019
        %v1393 = vpop.f32.mrb[0].mxu0
        %v1394 = vadd.f32 %v1102, %v1393
        %v1395 = vpop.f32.mrb[0].mxu0
        %v1396 = vadd.f32 %v1106, %v1395
        %v1397 = vpop.f32.mrb[0].mxu0
        %v1398 = vpop.f32.mrb[0].mxu0
        %1399 = vdwg.mxu0
        %1400 = vmatprep.subr.bf16.mxu0 %v1286
        %1401 = vmatpush1.bf16.msra.mxu0 %v1285
        %1402 = vmatprep.subr.bf16.mxu0 %v1288
        %1403 = vmatpush1.bf16.msra.mxu0 %v1287
        %1404 = vmatprep.subr.bf16.mxu0 %v1290
        %1405 = vmatpush1.bf16.msra.mxu0 %v1289
        %1406 = vmatprep.subr.bf16.mxu0 %v1292
        %1407 = vmatpush1.bf16.msra.mxu0 %v1291
        %1408 = vmatprep.subr.bf16.mxu0 %v1294
        %1409 = vmatpush1.bf16.msra.mxu0 %v1293
        %1410 = vmatprep.subr.bf16.mxu0 %v1296
        %1411 = vmatpush1.bf16.msra.mxu0 %v1295
        %1412 = vmatprep.subr.bf16.mxu0 %v1298
        %1413 = vmatpush1.bf16.msra.mxu0 %v1297
        %1414 = vmatprep.subr.bf16.mxu0 %v1300
        %1415 = vmatpush1.bf16.msra.mxu0 %v1299
        %1416 = vmatprep.subr.bf16.mxu0 0
        %1417 = vmatpush1.bf16.msra.mxu0 0
        %1418 = vmatprep.subr.bf16.mxu0 0
        %1419 = vmatpush1.bf16.msra.mxu0 0
        %1420 = vmatprep.subr.bf16.mxu0 0
        %1421 = vmatpush1.bf16.msra.mxu0 0
        %1422 = vmatprep.subr.bf16.mxu0 0
        %1423 = vmatpush1.bf16.msra.mxu0 0
        %1424 = vmatprep.subr.bf16.mxu0 0
        %1425 = vmatpush1.bf16.msra.mxu0 0
        %1426 = vmatprep.subr.bf16.mxu0 0
        %1427 = vmatpush1.bf16.msra.mxu0 0
        %1428 = vmatprep.subr.bf16.mxu0 0
        %1429 = vmatpush1.bf16.msra.mxu0 0
        %1430 = vmatprep.subr.bf16.mxu0 0
        %1431 = vmatpush1.bf16.msra.mxu0 0
        %1432 = vmatprep.mubr.bf16.mxu0 0
        %1433 = vmatmul.mubr.bf16.gmra.mrb[0].mxu0 %v1047
        %v1434 = vpop.f32.mrb[0].mxu0
        %v1435 = vadd.f32 %v1384, %v1434
        %v1436 = vpop.f32.mrb[0].mxu0
        %v1437 = vadd.f32 %v1386, %v1436
        %v1438 = vpop.f32.mrb[0].mxu0
        %v1439 = vadd.f32 %v1388, %v1438
        %v1440 = vpop.f32.mrb[0].mxu0
        %v1441 = vadd.f32 %v1390, %v1440
        %1442 = vmatprep.mubr.bf16.mxu0 0
        %1443 = vmatmul.mubr.bf16.gmra.mrb[0].mxu0 %v1048
        %v1444 = vpop.f32.mrb[0].mxu0
        %v1445 = vadd.f32 %v1394, %v1444
        %v1446 = vpop.f32.mrb[0].mxu0
        %v1447 = vadd.f32 %v1396, %v1446
        %v1448 = vpop.f32.mrb[0].mxu0
        %v1449 = vpop.f32.mrb[0].mxu0
        %1450 = vdwg.mxu0
        %v1451 = vmax.f32 %v1435, 0.0
        %v1452 = vmax.f32 %v1437, 0.0
        %v1453 = vmax.f32 %v1439, 0.0
        %v1454 = vmax.f32 %v1441, 0.0
        %v1455 = vmax.f32 %v1445, 0.0
        %v1456 = vmax.f32 %v1447, 0.0
        %v1457 = vlaneseq
        %v1458 = vshrl.u32 %v1457, 7
        %v1459 = vadd.s32 %v1458, 8
        %v1460 = vadd.s32 %v1458, 16
        %vm1461 = vcmp.lt.s32.totalorder %v1458, 15
        %vm1462 = vcmp.lt.s32.totalorder %v1459, 15
        %vm1463 = vcmp.lt.s32.totalorder %v1460, 15
        %v1464 = vsel %vm1461, 1, 0
        %v1465 = vsel %vm1462, 1, 0
        %v1466 = vsel %vm1463, 1, 0
        %vm1467 = vcmp.eq.s32.totalorder %v1464, 1
        %vm1468 = vcmp.eq.s32.totalorder %v1465, 1
        %vm1469 = vcmp.eq.s32.totalorder %v1466, 1
        %v1470 = vsel %vm1467, %v1451, 0.0
        %v1471 = vsel %vm1467, %v1452, 0.0
        %v1472 = vsel %vm1468, %v1453, 0.0
        %v1473 = vsel %vm1468, %v1454, 0.0
        %v1474 = vsel %vm1469, %v1455, 0.0
        %v1475 = vsel %vm1469, %v1456, 0.0
        %v1476 = vadd.f32 %v1470, %v1472
        %v1477 = vadd.f32 %v1476, %v1474
        %v1478 = vrot.slane %v1477, 4
        %v1479 = vadd.f32 %v1477, %v1478
        %v1480 = vrot.slane %v1479, 2
        %v1481 = vadd.f32 %v1479, %v1480
        %v1482 = vrot.slane %v1481, 1
        %v1483 = vadd.f32 %v1481, %v1482
        %v1484 = vadd.f32 %v1471, %v1473
        %v1485 = vadd.f32 %v1484, %v1475
        %v1486 = vrot.slane %v1485, 4
        %v1487 = vadd.f32 %v1485, %v1486
        %v1488 = vrot.slane %v1487, 2
        %v1489 = vadd.f32 %v1487, %v1488
        %v1490 = vrot.slane %v1489, 1
        %v1491 = vadd.f32 %v1489, %v1490
        %v1492 = vpack.c.bf16 %v1483, %v1483
        %v1493 = vpack.c.bf16 %v1491, %v1491
        %v1494 = vld [vmem:[#allocation10] sm:$0xff]
        %v1495 = vld [vmem:[#allocation10 + $0x8] sm:$0xff]
        %v1496 = vld [vmem:[#allocation10 + $0x10] sm:$0xff]
        %v1497 = vld [vmem:[#allocation10 + $0x18] sm:$0xff]
        %v1498 = vld [vmem:[#allocation10 + $0x20] sm:$0xff]
        %v1499 = vld [vmem:[#allocation10 + $0x28] sm:$0xff]
        %v1500 = vld [vmem:[#allocation10 + $0x30] sm:$0xff]
        %v1501 = vld [vmem:[#allocation10 + $0x38] sm:$0xff]
        %v1502 = vld [vmem:[#allocation10 + $0x40] sm:$0xff]
        %v1503 = vld [vmem:[#allocation10 + $0x48] sm:$0xff]
        %v1504 = vld [vmem:[#allocation10 + $0x50] sm:$0xff]
        %v1505 = vld [vmem:[#allocation10 + $0x58] sm:$0xff]
        %v1506 = vld [vmem:[#allocation10 + $0x60] sm:$0xff]
        %v1507 = vld [vmem:[#allocation10 + $0x68] sm:$0xff]
        %v1508 = vld [vmem:[#allocation10 + $0x70] sm:$0xff]
        %v1509 = vld [vmem:[#allocation10 + $0x78] sm:$0xff]
        %v1510 = vld [vmem:[#allocation10 + $0x80] sm:$0xff]
        %v1511 = vld [vmem:[#allocation10 + $0x88] sm:$0xff]
        %v1512 = vld [vmem:[#allocation10 + $0x90] sm:$0xff]
        %v1513 = vld [vmem:[#allocation10 + $0x98] sm:$0xff]
        %v1514 = vld [vmem:[#allocation10 + $0xa0] sm:$0xff]
        %v1515 = vld [vmem:[#allocation10 + $0xa8] sm:$0xff]
        %v1516 = vld [vmem:[#allocation10 + $0xb0] sm:$0xff]
        %v1517 = vld [vmem:[#allocation10 + $0xb8] sm:$0xff]
        %v1518 = vld [vmem:[#allocation10 + $0xc0] sm:$0xff]
        %v1519 = vld [vmem:[#allocation10 + $0xc8] sm:$0xff]
        %v1520 = vld [vmem:[#allocation10 + $0xd0] sm:$0xff]
        %v1521 = vld [vmem:[#allocation10 + $0xd8] sm:$0xff]
        %v1522 = vld [vmem:[#allocation10 + $0xe0] sm:$0xff]
        %v1523 = vld [vmem:[#allocation10 + $0xe8] sm:$0xff]
        %v1524 = vld [vmem:[#allocation10 + $0xf0] sm:$0xff]
        %v1525 = vld [vmem:[#allocation10 + $0xf8] sm:$0xff]
        %v1526 = vld [vmem:[#allocation10 + $0x100] sm:$0xff]
        %v1527 = vld [vmem:[#allocation10 + $0x108] sm:$0xff]
        %v1528 = vld [vmem:[#allocation10 + $0x110] sm:$0xff]
        %v1529 = vld [vmem:[#allocation10 + $0x118] sm:$0xff]
        %v1530 = vld [vmem:[#allocation10 + $0x120] sm:$0xff]
        %v1531 = vld [vmem:[#allocation10 + $0x128] sm:$0xff]
        %v1532 = vld [vmem:[#allocation10 + $0x130] sm:$0xff]
        %v1533 = vld [vmem:[#allocation10 + $0x138] sm:$0xff]
        %v1534 = vld [vmem:[#allocation10 + $0x140] sm:$0xff]
        %v1535 = vld [vmem:[#allocation10 + $0x148] sm:$0xff]
        %v1536 = vld [vmem:[#allocation10 + $0x150] sm:$0xff]
        %v1537 = vld [vmem:[#allocation10 + $0x158] sm:$0xff]
        %v1538 = vld [vmem:[#allocation10 + $0x160] sm:$0xff]
        %v1539 = vld [vmem:[#allocation10 + $0x168] sm:$0xff]
        %v1540 = vld [vmem:[#allocation10 + $0x170] sm:$0xff]
        %v1541 = vld [vmem:[#allocation10 + $0x178] sm:$0xff]
        %v1542 = vld [vmem:[#allocation10 + $0x180] sm:$0xff]
        %v1543 = vld [vmem:[#allocation10 + $0x188] sm:$0xff]
        %v1544 = vld [vmem:[#allocation10 + $0x190] sm:$0xff]
        %v1545 = vld [vmem:[#allocation10 + $0x198] sm:$0xff]
        %v1546 = vld [vmem:[#allocation10 + $0x1a0] sm:$0xff]
        %v1547 = vld [vmem:[#allocation10 + $0x1a8] sm:$0xff]
        %v1548 = vld [vmem:[#allocation10 + $0x1b0] sm:$0xff]
        %v1549 = vld [vmem:[#allocation10 + $0x1b8] sm:$0xff]
        %v1550 = vld [vmem:[#allocation10 + $0x1c0] sm:$0xff]
        %v1551 = vld [vmem:[#allocation10 + $0x1c8] sm:$0xff]
        %v1552 = vld [vmem:[#allocation10 + $0x1d0] sm:$0xff]
        %v1553 = vld [vmem:[#allocation10 + $0x1d8] sm:$0xff]
        %v1554 = vld [vmem:[#allocation10 + $0x1e0] sm:$0xff]
        %v1555 = vld [vmem:[#allocation10 + $0x1e8] sm:$0xff]
        %v1556 = vld [vmem:[#allocation10 + $0x1f0] sm:$0xff]
        %v1557 = vld [vmem:[#allocation10 + $0x1f8] sm:$0xff]
        %v1558 = vld [vmem:[%s7] sm:$0xf]
        %v1623 = vunpack.c.l.b16 %v1494
        %v1624 = vunpack.c.h.b16 %v1494
        %v1625 = vunpack.c.l.b16 %v1495
        %v1626 = vunpack.c.h.b16 %v1495
        %v1627 = vunpack.c.l.b16 %v1496
        %v1628 = vunpack.c.h.b16 %v1496
        %v1629 = vunpack.c.l.b16 %v1497
        %v1630 = vunpack.c.h.b16 %v1497
        %v1631 = vunpack.c.l.b16 %v1498
        %v1632 = vunpack.c.h.b16 %v1498
        %v1633 = vunpack.c.l.b16 %v1499
        %v1634 = vunpack.c.h.b16 %v1499
        %v1635 = vunpack.c.l.b16 %v1500
        %v1636 = vunpack.c.h.b16 %v1500
        %v1637 = vunpack.c.l.b16 %v1501
        %v1638 = vunpack.c.h.b16 %v1501
        %v1639 = vunpack.c.l.b16 %v1502
        %v1640 = vunpack.c.h.b16 %v1502
        %v1641 = vunpack.c.l.b16 %v1503
        %v1642 = vunpack.c.h.b16 %v1503
        %v1643 = vunpack.c.l.b16 %v1504
        %v1644 = vunpack.c.h.b16 %v1504
        %v1645 = vunpack.c.l.b16 %v1505
        %v1646 = vunpack.c.h.b16 %v1505
        %v1647 = vunpack.c.l.b16 %v1506
        %v1648 = vunpack.c.h.b16 %v1506
        %v1649 = vunpack.c.l.b16 %v1507
        %v1650 = vunpack.c.h.b16 %v1507
        %v1651 = vunpack.c.l.b16 %v1508
        %v1652 = vunpack.c.h.b16 %v1508
        %v1653 = vunpack.c.l.b16 %v1509
        %v1654 = vunpack.c.h.b16 %v1509
        %v1655 = vunpack.c.l.b16 %v1510
        %v1656 = vunpack.c.h.b16 %v1510
        %v1657 = vunpack.c.l.b16 %v1511
        %v1658 = vunpack.c.h.b16 %v1511
        %v1659 = vunpack.c.l.b16 %v1512
        %v1660 = vunpack.c.h.b16 %v1512
        %v1661 = vunpack.c.l.b16 %v1513
        %v1662 = vunpack.c.h.b16 %v1513
        %v1663 = vunpack.c.l.b16 %v1514
        %v1664 = vunpack.c.h.b16 %v1514
        %v1665 = vunpack.c.l.b16 %v1515
        %v1666 = vunpack.c.h.b16 %v1515
        %v1667 = vunpack.c.l.b16 %v1516
        %v1668 = vunpack.c.h.b16 %v1516
        %v1669 = vunpack.c.l.b16 %v1517
        %v1670 = vunpack.c.h.b16 %v1517
        %v1671 = vunpack.c.l.b16 %v1518
        %v1672 = vunpack.c.h.b16 %v1518
        %v1673 = vunpack.c.l.b16 %v1519
        %v1674 = vunpack.c.h.b16 %v1519
        %v1675 = vunpack.c.l.b16 %v1520
        %v1676 = vunpack.c.h.b16 %v1520
        %v1677 = vunpack.c.l.b16 %v1521
        %v1678 = vunpack.c.h.b16 %v1521
        %v1679 = vunpack.c.l.b16 %v1522
        %v1680 = vunpack.c.h.b16 %v1522
        %v1681 = vunpack.c.l.b16 %v1523
        %v1682 = vunpack.c.h.b16 %v1523
        %v1683 = vunpack.c.l.b16 %v1524
        %v1684 = vunpack.c.h.b16 %v1524
        %v1685 = vunpack.c.l.b16 %v1525
        %v1686 = vunpack.c.h.b16 %v1525
        %v1687 = vunpack.c.l.b16 %v1526
        %v1688 = vunpack.c.h.b16 %v1526
        %v1689 = vunpack.c.l.b16 %v1527
        %v1690 = vunpack.c.h.b16 %v1527
        %v1691 = vunpack.c.l.b16 %v1528
        %v1692 = vunpack.c.h.b16 %v1528
        %v1693 = vunpack.c.l.b16 %v1529
        %v1694 = vunpack.c.h.b16 %v1529
        %v1695 = vunpack.c.l.b16 %v1530
        %v1696 = vunpack.c.h.b16 %v1530
        %v1697 = vunpack.c.l.b16 %v1531
        %v1698 = vunpack.c.h.b16 %v1531
        %v1699 = vunpack.c.l.b16 %v1532
        %v1700 = vunpack.c.h.b16 %v1532
        %v1701 = vunpack.c.l.b16 %v1533
        %v1702 = vunpack.c.h.b16 %v1533
        %v1703 = vunpack.c.l.b16 %v1534
        %v1704 = vunpack.c.h.b16 %v1534
        %v1705 = vunpack.c.l.b16 %v1535
        %v1706 = vunpack.c.h.b16 %v1535
        %v1707 = vunpack.c.l.b16 %v1536
        %v1708 = vunpack.c.h.b16 %v1536
        %v1709 = vunpack.c.l.b16 %v1537
        %v1710 = vunpack.c.h.b16 %v1537
        %v1711 = vunpack.c.l.b16 %v1538
        %v1712 = vunpack.c.h.b16 %v1538
        %v1713 = vunpack.c.l.b16 %v1539
        %v1714 = vunpack.c.h.b16 %v1539
        %v1715 = vunpack.c.l.b16 %v1540
        %v1716 = vunpack.c.h.b16 %v1540
        %v1717 = vunpack.c.l.b16 %v1541
        %v1718 = vunpack.c.h.b16 %v1541
        %v1719 = vunpack.c.l.b16 %v1542
        %v1720 = vunpack.c.h.b16 %v1542
        %v1721 = vunpack.c.l.b16 %v1543
        %v1722 = vunpack.c.h.b16 %v1543
        %v1723 = vunpack.c.l.b16 %v1544
        %v1724 = vunpack.c.h.b16 %v1544
        %v1725 = vunpack.c.l.b16 %v1545
        %v1726 = vunpack.c.h.b16 %v1545
        %v1727 = vunpack.c.l.b16 %v1546
        %v1728 = vunpack.c.h.b16 %v1546
        %v1729 = vunpack.c.l.b16 %v1547
        %v1730 = vunpack.c.h.b16 %v1547
        %v1731 = vunpack.c.l.b16 %v1548
        %v1732 = vunpack.c.h.b16 %v1548
        %v1733 = vunpack.c.l.b16 %v1549
        %v1734 = vunpack.c.h.b16 %v1549
        %v1735 = vunpack.c.l.b16 %v1550
        %v1736 = vunpack.c.h.b16 %v1550
        %v1737 = vunpack.c.l.b16 %v1551
        %v1738 = vunpack.c.h.b16 %v1551
        %v1739 = vunpack.c.l.b16 %v1552
        %v1740 = vunpack.c.h.b16 %v1552
        %v1741 = vunpack.c.l.b16 %v1553
        %v1742 = vunpack.c.h.b16 %v1553
        %v1743 = vunpack.c.l.b16 %v1554
        %v1744 = vunpack.c.h.b16 %v1554
        %v1745 = vunpack.c.l.b16 %v1555
        %v1746 = vunpack.c.h.b16 %v1555
        %v1747 = vunpack.c.l.b16 %v1556
        %v1748 = vunpack.c.h.b16 %v1556
        %v1749 = vunpack.c.l.b16 %v1557
        %v1750 = vunpack.c.h.b16 %v1557
        %v1751 = vpack.c.b16 %v1627, %v1623
        %v1752 = vpack.c.b16 %v1628, %v1624
        %v1753 = vpack.c.b16 %v1629, %v1625
        %v1754 = vpack.c.b16 %v1630, %v1626
        %v1755 = vpack.c.b16 %v1635, %v1631
        %v1756 = vpack.c.b16 %v1636, %v1632
        %v1757 = vpack.c.b16 %v1637, %v1633
        %v1758 = vpack.c.b16 %v1638, %v1634
        %v1759 = vpack.c.b16 %v1643, %v1639
        %v1760 = vpack.c.b16 %v1644, %v1640
        %v1761 = vpack.c.b16 %v1645, %v1641
        %v1762 = vpack.c.b16 %v1646, %v1642
        %v1763 = vpack.c.b16 %v1651, %v1647
        %v1764 = vpack.c.b16 %v1652, %v1648
        %v1765 = vpack.c.b16 %v1653, %v1649
        %v1766 = vpack.c.b16 %v1654, %v1650
        %v1767 = vpack.c.b16 %v1659, %v1655
        %v1768 = vpack.c.b16 %v1660, %v1656
        %v1769 = vpack.c.b16 %v1661, %v1657
        %v1770 = vpack.c.b16 %v1662, %v1658
        %v1771 = vpack.c.b16 %v1667, %v1663
        %v1772 = vpack.c.b16 %v1668, %v1664
        %v1773 = vpack.c.b16 %v1669, %v1665
        %v1774 = vpack.c.b16 %v1670, %v1666
        %v1775 = vpack.c.b16 %v1675, %v1671
        %v1776 = vpack.c.b16 %v1676, %v1672
        %v1777 = vpack.c.b16 %v1677, %v1673
        %v1778 = vpack.c.b16 %v1678, %v1674
        %v1779 = vpack.c.b16 %v1683, %v1679
        %v1780 = vpack.c.b16 %v1684, %v1680
        %v1781 = vpack.c.b16 %v1685, %v1681
        %v1782 = vpack.c.b16 %v1686, %v1682
        %v1783 = vpack.c.b16 %v1691, %v1687
        %v1784 = vpack.c.b16 %v1692, %v1688
        %v1785 = vpack.c.b16 %v1693, %v1689
        %v1786 = vpack.c.b16 %v1694, %v1690
        %v1787 = vpack.c.b16 %v1699, %v1695
        %v1788 = vpack.c.b16 %v1700, %v1696
        %v1789 = vpack.c.b16 %v1701, %v1697
        %v1790 = vpack.c.b16 %v1702, %v1698
        %v1791 = vpack.c.b16 %v1707, %v1703
        %v1792 = vpack.c.b16 %v1708, %v1704
        %v1793 = vpack.c.b16 %v1709, %v1705
        %v1794 = vpack.c.b16 %v1710, %v1706
        %v1795 = vpack.c.b16 %v1715, %v1711
        %v1796 = vpack.c.b16 %v1716, %v1712
        %v1797 = vpack.c.b16 %v1717, %v1713
        %v1798 = vpack.c.b16 %v1718, %v1714
        %v1799 = vpack.c.b16 %v1723, %v1719
        %v1800 = vpack.c.b16 %v1724, %v1720
        %v1801 = vpack.c.b16 %v1725, %v1721
        %v1802 = vpack.c.b16 %v1726, %v1722
        %v1803 = vpack.c.b16 %v1731, %v1727
        %v1804 = vpack.c.b16 %v1732, %v1728
        %v1805 = vpack.c.b16 %v1733, %v1729
        %v1806 = vpack.c.b16 %v1734, %v1730
        %v1807 = vpack.c.b16 %v1739, %v1735
        %v1808 = vpack.c.b16 %v1740, %v1736
        %v1809 = vpack.c.b16 %v1741, %v1737
        %v1810 = vpack.c.b16 %v1742, %v1738
        %v1811 = vpack.c.b16 %v1747, %v1743
        %v1812 = vpack.c.b16 %v1748, %v1744
        %v1813 = vpack.c.b16 %v1749, %v1745
        %v1814 = vpack.c.b16 %v1750, %v1746
        %v1880 = vlaneseq
        %v1881 = vshrl.u32 %v1880, 7
        %v1882 = vsub.s32 0, %v1881
        %v1883 = vrot.slane %v1558, %v1882
        %v1884 = vlaneseq
        %v1885 = vshrl.u32 %v1884, 7
        %v1886 = vsub.s32 1, %v1885
        %v1887 = vrot.slane %v1558, %v1886
        %v1888 = vlaneseq
        %v1889 = vshrl.u32 %v1888, 7
        %v1890 = vsub.s32 2, %v1889
        %v1891 = vrot.slane %v1558, %v1890
        %v1892 = vlaneseq
        %v1893 = vshrl.u32 %v1892, 7
        %v1894 = vsub.s32 3, %v1893
        %v1895 = vrot.slane %v1558, %v1894
        %1900 = vmatprep.subr.bf16.mxu0 %v1752
        %1901 = vmatpush1.bf16.msra.mxu0 %v1751
        %1902 = vmatprep.subr.bf16.mxu0 %v1756
        %1903 = vmatpush1.bf16.msra.mxu0 %v1755
        %1904 = vmatprep.subr.bf16.mxu0 %v1760
        %1905 = vmatpush1.bf16.msra.mxu0 %v1759
        %1906 = vmatprep.subr.bf16.mxu0 %v1764
        %1907 = vmatpush1.bf16.msra.mxu0 %v1763
        %1908 = vmatprep.subr.bf16.mxu0 %v1768
        %1909 = vmatpush1.bf16.msra.mxu0 %v1767
        %1910 = vmatprep.subr.bf16.mxu0 %v1772
        %1911 = vmatpush1.bf16.msra.mxu0 %v1771
        %1912 = vmatprep.subr.bf16.mxu0 %v1776
        %1913 = vmatpush1.bf16.msra.mxu0 %v1775
        %1914 = vmatprep.subr.bf16.mxu0 %v1780
        %1915 = vmatpush1.bf16.msra.mxu0 %v1779
        %1916 = vmatprep.subr.bf16.mxu0 %v1784
        %1917 = vmatpush1.bf16.msra.mxu0 %v1783
        %1918 = vmatprep.subr.bf16.mxu0 %v1788
        %1919 = vmatpush1.bf16.msra.mxu0 %v1787
        %1920 = vmatprep.subr.bf16.mxu0 %v1792
        %1921 = vmatpush1.bf16.msra.mxu0 %v1791
        %1922 = vmatprep.subr.bf16.mxu0 %v1796
        %1923 = vmatpush1.bf16.msra.mxu0 %v1795
        %1924 = vmatprep.subr.bf16.mxu0 %v1800
        %1925 = vmatpush1.bf16.msra.mxu0 %v1799
        %1926 = vmatprep.subr.bf16.mxu0 %v1804
        %1927 = vmatpush1.bf16.msra.mxu0 %v1803
        %1928 = vmatprep.subr.bf16.mxu0 %v1808
        %1929 = vmatpush1.bf16.msra.mxu0 %v1807
        %1930 = vmatprep.subr.bf16.mxu0 %v1812
        %1931 = vmatpush1.bf16.msra.mxu0 %v1811
        %1932 = vmatprep.mubr.bf16.mxu0 %v1493
        %1933 = vmatmul.mubr.bf16.gmra.mrb[0].mxu0 %v1492
        %v1934 = vpop.f32.mrb[0].mxu0
        %v1935 = vadd.f32 %v1883, %v1934
        %v1936 = vpop.f32.mrb[0].mxu0
        %v1937 = vadd.f32 %v1887, %v1936
        %v1938 = vpop.f32.mrb[0].mxu0
        %v1939 = vpop.f32.mrb[0].mxu0
        %1940 = vdwg.mxu0
        %1941 = vmatprep.subr.bf16.mxu0 %v1754
        %1942 = vmatpush1.bf16.msra.mxu0 %v1753
        %1943 = vmatprep.subr.bf16.mxu0 %v1758
        %1944 = vmatpush1.bf16.msra.mxu0 %v1757
        %1945 = vmatprep.subr.bf16.mxu0 %v1762
        %1946 = vmatpush1.bf16.msra.mxu0 %v1761
        %1947 = vmatprep.subr.bf16.mxu0 %v1766
        %1948 = vmatpush1.bf16.msra.mxu0 %v1765
        %1949 = vmatprep.subr.bf16.mxu0 %v1770
        %1950 = vmatpush1.bf16.msra.mxu0 %v1769
        %1951 = vmatprep.subr.bf16.mxu0 %v1774
        %1952 = vmatpush1.bf16.msra.mxu0 %v1773
        %1953 = vmatprep.subr.bf16.mxu0 %v1778
        %1954 = vmatpush1.bf16.msra.mxu0 %v1777
        %1955 = vmatprep.subr.bf16.mxu0 %v1782
        %1956 = vmatpush1.bf16.msra.mxu0 %v1781
        %1957 = vmatprep.subr.bf16.mxu0 %v1786
        %1958 = vmatpush1.bf16.msra.mxu0 %v1785
        %1959 = vmatprep.subr.bf16.mxu0 %v1790
        %1960 = vmatpush1.bf16.msra.mxu0 %v1789
        %1961 = vmatprep.subr.bf16.mxu0 %v1794
        %1962 = vmatpush1.bf16.msra.mxu0 %v1793
        %1963 = vmatprep.subr.bf16.mxu0 %v1798
        %1964 = vmatpush1.bf16.msra.mxu0 %v1797
        %1965 = vmatprep.subr.bf16.mxu0 %v1802
        %1966 = vmatpush1.bf16.msra.mxu0 %v1801
        %1967 = vmatprep.subr.bf16.mxu0 %v1806
        %1968 = vmatpush1.bf16.msra.mxu0 %v1805
        %1969 = vmatprep.subr.bf16.mxu0 %v1810
        %1970 = vmatpush1.bf16.msra.mxu0 %v1809
        %1971 = vmatprep.subr.bf16.mxu0 %v1814
        %1972 = vmatpush1.bf16.msra.mxu0 %v1813
        %1973 = vmatprep.mubr.bf16.mxu0 %v1493
        %1974 = vmatmul.mubr.bf16.gmra.mrb[0].mxu0 %v1492
        %v1975 = vpop.f32.mrb[0].mxu0
        %v1976 = vadd.f32 %v1891, %v1975
        %v1977 = vpop.f32.mrb[0].mxu0
        %v1978 = vadd.f32 %v1895, %v1977
        %v1979 = vpop.f32.mrb[0].mxu0
        %v1980 = vpop.f32.mrb[0].mxu0
        %1981 = vdwg.mxu0
        %v1982 = vmax.f32 %v1935, 0.0
        %v1983 = vmax.f32 %v1937, 0.0
        %v1984 = vmax.f32 %v1976, 0.0
        %v1985 = vmax.f32 %v1978, 0.0
        %v1986 = vpack.c.bf16 %v1982, %v1982
        %v1987 = vpack.c.bf16 %v1983, %v1983
        %v1988 = vpack.c.bf16 %v1984, %v1984
        %v1989 = vpack.c.bf16 %v1985, %v1985
        %v1990 = vld [vmem:[#allocation12] sm:$0xff]
        %v1991 = vld [vmem:[#allocation12 + $0x8] sm:$0xff]
        %v1992 = vld [vmem:[#allocation12 + $0x10] sm:$0xff]
        %v1993 = vld [vmem:[#allocation12 + $0x18] sm:$0xff]
        %v1994 = vld [vmem:[#allocation12 + $0x20] sm:$0xff]
        %v1995 = vld [vmem:[#allocation12 + $0x28] sm:$0xff]
        %v1996 = vld [vmem:[#allocation12 + $0x30] sm:$0xff]
        %v1997 = vld [vmem:[#allocation12 + $0x38] sm:$0xff]
        %v1998 = vld [vmem:[#allocation12 + $0x40] sm:$0xff]
        %v1999 = vld [vmem:[#allocation12 + $0x48] sm:$0xff]
        %v2000 = vld [vmem:[#allocation12 + $0x50] sm:$0xff]
        %v2001 = vld [vmem:[#allocation12 + $0x58] sm:$0xff]
        %v2002 = vld [vmem:[#allocation12 + $0x60] sm:$0xff]
        %v2003 = vld [vmem:[#allocation12 + $0x68] sm:$0xff]
        %v2004 = vld [vmem:[#allocation12 + $0x70] sm:$0xff]
        %v2005 = vld [vmem:[#allocation12 + $0x78] sm:$0xff]
        %v2006 = vld [vmem:[#allocation12 + $0x80] sm:$0xff]
        %v2007 = vld [vmem:[#allocation12 + $0x88] sm:$0xff]
        %v2008 = vld [vmem:[#allocation12 + $0x90] sm:$0xff]
        %v2009 = vld [vmem:[#allocation12 + $0x98] sm:$0xff]
        %v2010 = vld [vmem:[#allocation12 + $0xa0] sm:$0xff]
        %v2011 = vld [vmem:[#allocation12 + $0xa8] sm:$0xff]
        %v2012 = vld [vmem:[#allocation12 + $0xb0] sm:$0xff]
        %v2013 = vld [vmem:[#allocation12 + $0xb8] sm:$0xff]
        %v2014 = vld [vmem:[#allocation12 + $0xc0] sm:$0xff]
        %v2015 = vld [vmem:[#allocation12 + $0xc8] sm:$0xff]
        %v2016 = vld [vmem:[#allocation12 + $0xd0] sm:$0xff]
        %v2017 = vld [vmem:[#allocation12 + $0xd8] sm:$0xff]
        %v2018 = vld [vmem:[#allocation12 + $0xe0] sm:$0xff]
        %v2019 = vld [vmem:[#allocation12 + $0xe8] sm:$0xff]
        %v2020 = vld [vmem:[#allocation12 + $0xf0] sm:$0xff]
        %v2021 = vld [vmem:[#allocation12 + $0xf8] sm:$0xff]
        %v2022 = vld [vmem:[#allocation12 + $0x100] sm:$0xff]
        %v2023 = vld [vmem:[#allocation12 + $0x108] sm:$0xff]
        %v2024 = vld [vmem:[#allocation12 + $0x110] sm:$0xff]
        %v2025 = vld [vmem:[#allocation12 + $0x118] sm:$0xff]
        %v2026 = vld [vmem:[#allocation12 + $0x120] sm:$0xff]
        %v2027 = vld [vmem:[#allocation12 + $0x128] sm:$0xff]
        %v2028 = vld [vmem:[#allocation12 + $0x130] sm:$0xff]
        %v2029 = vld [vmem:[#allocation12 + $0x138] sm:$0xff]
        %v2030 = vld [vmem:[#allocation12 + $0x140] sm:$0xff]
        %v2031 = vld [vmem:[#allocation12 + $0x148] sm:$0xff]
        %v2032 = vld [vmem:[#allocation12 + $0x150] sm:$0xff]
        %v2033 = vld [vmem:[#allocation12 + $0x158] sm:$0xff]
        %v2034 = vld [vmem:[#allocation12 + $0x160] sm:$0xff]
        %v2035 = vld [vmem:[#allocation12 + $0x168] sm:$0xff]
        %v2036 = vld [vmem:[#allocation12 + $0x170] sm:$0xff]
        %v2037 = vld [vmem:[#allocation12 + $0x178] sm:$0xff]
        %v2038 = vld [vmem:[#allocation12 + $0x180] sm:$0xff]
        %v2039 = vld [vmem:[#allocation12 + $0x188] sm:$0xff]
        %v2040 = vld [vmem:[#allocation12 + $0x190] sm:$0xff]
        %v2041 = vld [vmem:[#allocation12 + $0x198] sm:$0xff]
        %v2042 = vld [vmem:[#allocation12 + $0x1a0] sm:$0xff]
        %v2043 = vld [vmem:[#allocation12 + $0x1a8] sm:$0xff]
        %v2044 = vld [vmem:[#allocation12 + $0x1b0] sm:$0xff]
        %v2045 = vld [vmem:[#allocation12 + $0x1b8] sm:$0xff]
        %v2046 = vld [vmem:[#allocation12 + $0x1c0] sm:$0xff]
        %v2047 = vld [vmem:[#allocation12 + $0x1c8] sm:$0xff]
        %v2048 = vld [vmem:[#allocation12 + $0x1d0] sm:$0xff]
        %v2049 = vld [vmem:[#allocation12 + $0x1d8] sm:$0xff]
        %v2050 = vld [vmem:[#allocation12 + $0x1e0] sm:$0xff]
        %v2051 = vld [vmem:[#allocation12 + $0x1e8] sm:$0xff]
        %v2052 = vld [vmem:[#allocation12 + $0x1f0] sm:$0xff]
        %v2053 = vld [vmem:[#allocation12 + $0x1f8] sm:$0xff]
        %v2054 = vld [vmem:[#allocation13] sm:$0x3]
        %v2119 = vunpack.c.l.b16 %v1990
        %v2120 = vunpack.c.h.b16 %v1990
        %v2121 = vunpack.c.l.b16 %v1991
        %v2122 = vunpack.c.h.b16 %v1991
        %v2123 = vunpack.c.l.b16 %v1992
        %v2124 = vunpack.c.h.b16 %v1992
        %v2125 = vunpack.c.l.b16 %v1993
        %v2126 = vunpack.c.h.b16 %v1993
        %v2127 = vunpack.c.l.b16 %v1994
        %v2128 = vunpack.c.h.b16 %v1994
        %v2129 = vunpack.c.l.b16 %v1995
        %v2130 = vunpack.c.h.b16 %v1995
        %v2131 = vunpack.c.l.b16 %v1996
        %v2132 = vunpack.c.h.b16 %v1996
        %v2133 = vunpack.c.l.b16 %v1997
        %v2134 = vunpack.c.h.b16 %v1997
        %v2135 = vunpack.c.l.b16 %v1998
        %v2136 = vunpack.c.h.b16 %v1998
        %v2137 = vunpack.c.l.b16 %v1999
        %v2138 = vunpack.c.h.b16 %v1999
        %v2139 = vunpack.c.l.b16 %v2000
        %v2140 = vunpack.c.h.b16 %v2000
        %v2141 = vunpack.c.l.b16 %v2001
        %v2142 = vunpack.c.h.b16 %v2001
        %v2143 = vunpack.c.l.b16 %v2002
        %v2144 = vunpack.c.h.b16 %v2002
        %v2145 = vunpack.c.l.b16 %v2003
        %v2146 = vunpack.c.h.b16 %v2003
        %v2147 = vunpack.c.l.b16 %v2004
        %v2148 = vunpack.c.h.b16 %v2004
        %v2149 = vunpack.c.l.b16 %v2005
        %v2150 = vunpack.c.h.b16 %v2005
        %v2151 = vunpack.c.l.b16 %v2006
        %v2152 = vunpack.c.h.b16 %v2006
        %v2153 = vunpack.c.l.b16 %v2007
        %v2154 = vunpack.c.h.b16 %v2007
        %v2155 = vunpack.c.l.b16 %v2008
        %v2156 = vunpack.c.h.b16 %v2008
        %v2157 = vunpack.c.l.b16 %v2009
        %v2158 = vunpack.c.h.b16 %v2009
        %v2159 = vunpack.c.l.b16 %v2010
        %v2160 = vunpack.c.h.b16 %v2010
        %v2161 = vunpack.c.l.b16 %v2011
        %v2162 = vunpack.c.h.b16 %v2011
        %v2163 = vunpack.c.l.b16 %v2012
        %v2164 = vunpack.c.h.b16 %v2012
        %v2165 = vunpack.c.l.b16 %v2013
        %v2166 = vunpack.c.h.b16 %v2013
        %v2167 = vunpack.c.l.b16 %v2014
        %v2168 = vunpack.c.h.b16 %v2014
        %v2169 = vunpack.c.l.b16 %v2015
        %v2170 = vunpack.c.h.b16 %v2015
        %v2171 = vunpack.c.l.b16 %v2016
        %v2172 = vunpack.c.h.b16 %v2016
        %v2173 = vunpack.c.l.b16 %v2017
        %v2174 = vunpack.c.h.b16 %v2017
        %v2175 = vunpack.c.l.b16 %v2018
        %v2176 = vunpack.c.h.b16 %v2018
        %v2177 = vunpack.c.l.b16 %v2019
        %v2178 = vunpack.c.h.b16 %v2019
        %v2179 = vunpack.c.l.b16 %v2020
        %v2180 = vunpack.c.h.b16 %v2020
        %v2181 = vunpack.c.l.b16 %v2021
        %v2182 = vunpack.c.h.b16 %v2021
        %v2183 = vunpack.c.l.b16 %v2022
        %v2184 = vunpack.c.h.b16 %v2022
        %v2185 = vunpack.c.l.b16 %v2023
        %v2186 = vunpack.c.h.b16 %v2023
        %v2187 = vunpack.c.l.b16 %v2024
        %v2188 = vunpack.c.h.b16 %v2024
        %v2189 = vunpack.c.l.b16 %v2025
        %v2190 = vunpack.c.h.b16 %v2025
        %v2191 = vunpack.c.l.b16 %v2026
        %v2192 = vunpack.c.h.b16 %v2026
        %v2193 = vunpack.c.l.b16 %v2027
        %v2194 = vunpack.c.h.b16 %v2027
        %v2195 = vunpack.c.l.b16 %v2028
        %v2196 = vunpack.c.h.b16 %v2028
        %v2197 = vunpack.c.l.b16 %v2029
        %v2198 = vunpack.c.h.b16 %v2029
        %v2199 = vunpack.c.l.b16 %v2030
        %v2200 = vunpack.c.h.b16 %v2030
        %v2201 = vunpack.c.l.b16 %v2031
        %v2202 = vunpack.c.h.b16 %v2031
        %v2203 = vunpack.c.l.b16 %v2032
        %v2204 = vunpack.c.h.b16 %v2032
        %v2205 = vunpack.c.l.b16 %v2033
        %v2206 = vunpack.c.h.b16 %v2033
        %v2207 = vunpack.c.l.b16 %v2034
        %v2208 = vunpack.c.h.b16 %v2034
        %v2209 = vunpack.c.l.b16 %v2035
        %v2210 = vunpack.c.h.b16 %v2035
        %v2211 = vunpack.c.l.b16 %v2036
        %v2212 = vunpack.c.h.b16 %v2036
        %v2213 = vunpack.c.l.b16 %v2037
        %v2214 = vunpack.c.h.b16 %v2037
        %v2215 = vunpack.c.l.b16 %v2038
        %v2216 = vunpack.c.h.b16 %v2038
        %v2217 = vunpack.c.l.b16 %v2039
        %v2218 = vunpack.c.h.b16 %v2039
        %v2219 = vunpack.c.l.b16 %v2040
        %v2220 = vunpack.c.h.b16 %v2040
        %v2221 = vunpack.c.l.b16 %v2041
        %v2222 = vunpack.c.h.b16 %v2041
        %v2223 = vunpack.c.l.b16 %v2042
        %v2224 = vunpack.c.h.b16 %v2042
        %v2225 = vunpack.c.l.b16 %v2043
        %v2226 = vunpack.c.h.b16 %v2043
        %v2227 = vunpack.c.l.b16 %v2044
        %v2228 = vunpack.c.h.b16 %v2044
        %v2229 = vunpack.c.l.b16 %v2045
        %v2230 = vunpack.c.h.b16 %v2045
        %v2231 = vunpack.c.l.b16 %v2046
        %v2232 = vunpack.c.h.b16 %v2046
        %v2233 = vunpack.c.l.b16 %v2047
        %v2234 = vunpack.c.h.b16 %v2047
        %v2235 = vunpack.c.l.b16 %v2048
        %v2236 = vunpack.c.h.b16 %v2048
        %v2237 = vunpack.c.l.b16 %v2049
        %v2238 = vunpack.c.h.b16 %v2049
        %v2239 = vunpack.c.l.b16 %v2050
        %v2240 = vunpack.c.h.b16 %v2050
        %v2241 = vunpack.c.l.b16 %v2051
        %v2242 = vunpack.c.h.b16 %v2051
        %v2243 = vunpack.c.l.b16 %v2052
        %v2244 = vunpack.c.h.b16 %v2052
        %v2245 = vunpack.c.l.b16 %v2053
        %v2246 = vunpack.c.h.b16 %v2053
        %v2247 = vpack.c.b16 %v2121, %v2119
        %v2248 = vpack.c.b16 %v2122, %v2120
        %v2249 = vpack.c.b16 %v2125, %v2123
        %v2250 = vpack.c.b16 %v2126, %v2124
        %v2251 = vpack.c.b16 %v2129, %v2127
        %v2252 = vpack.c.b16 %v2130, %v2128
        %v2253 = vpack.c.b16 %v2133, %v2131
        %v2254 = vpack.c.b16 %v2134, %v2132
        %v2255 = vpack.c.b16 %v2137, %v2135
        %v2256 = vpack.c.b16 %v2138, %v2136
        %v2257 = vpack.c.b16 %v2141, %v2139
        %v2258 = vpack.c.b16 %v2142, %v2140
        %v2259 = vpack.c.b16 %v2145, %v2143
        %v2260 = vpack.c.b16 %v2146, %v2144
        %v2261 = vpack.c.b16 %v2149, %v2147
        %v2262 = vpack.c.b16 %v2150, %v2148
        %v2263 = vpack.c.b16 %v2153, %v2151
        %v2264 = vpack.c.b16 %v2154, %v2152
        %v2265 = vpack.c.b16 %v2157, %v2155
        %v2266 = vpack.c.b16 %v2158, %v2156
        %v2267 = vpack.c.b16 %v2161, %v2159
        %v2268 = vpack.c.b16 %v2162, %v2160
        %v2269 = vpack.c.b16 %v2165, %v2163
        %v2270 = vpack.c.b16 %v2166, %v2164
        %v2271 = vpack.c.b16 %v2169, %v2167
        %v2272 = vpack.c.b16 %v2170, %v2168
        %v2273 = vpack.c.b16 %v2173, %v2171
        %v2274 = vpack.c.b16 %v2174, %v2172
        %v2275 = vpack.c.b16 %v2177, %v2175
        %v2276 = vpack.c.b16 %v2178, %v2176
        %v2277 = vpack.c.b16 %v2181, %v2179
        %v2278 = vpack.c.b16 %v2182, %v2180
        %v2279 = vpack.c.b16 %v2185, %v2183
        %v2280 = vpack.c.b16 %v2186, %v2184
        %v2281 = vpack.c.b16 %v2189, %v2187
        %v2282 = vpack.c.b16 %v2190, %v2188
        %v2283 = vpack.c.b16 %v2193, %v2191
        %v2284 = vpack.c.b16 %v2194, %v2192
        %v2285 = vpack.c.b16 %v2197, %v2195
        %v2286 = vpack.c.b16 %v2198, %v2196
        %v2287 = vpack.c.b16 %v2201, %v2199
        %v2288 = vpack.c.b16 %v2202, %v2200
        %v2289 = vpack.c.b16 %v2205, %v2203
        %v2290 = vpack.c.b16 %v2206, %v2204
        %v2291 = vpack.c.b16 %v2209, %v2207
        %v2292 = vpack.c.b16 %v2210, %v2208
        %v2293 = vpack.c.b16 %v2213, %v2211
        %v2294 = vpack.c.b16 %v2214, %v2212
        %v2295 = vpack.c.b16 %v2217, %v2215
        %v2296 = vpack.c.b16 %v2218, %v2216
        %v2297 = vpack.c.b16 %v2221, %v2219
        %v2298 = vpack.c.b16 %v2222, %v2220
        %v2299 = vpack.c.b16 %v2225, %v2223
        %v2300 = vpack.c.b16 %v2226, %v2224
        %v2301 = vpack.c.b16 %v2229, %v2227
        %v2302 = vpack.c.b16 %v2230, %v2228
        %v2303 = vpack.c.b16 %v2233, %v2231
        %v2304 = vpack.c.b16 %v2234, %v2232
        %v2305 = vpack.c.b16 %v2237, %v2235
        %v2306 = vpack.c.b16 %v2238, %v2236
        %v2307 = vpack.c.b16 %v2241, %v2239
        %v2308 = vpack.c.b16 %v2242, %v2240
        %v2309 = vpack.c.b16 %v2245, %v2243
        %v2310 = vpack.c.b16 %v2246, %v2244
        %v2376 = vlaneseq
        %v2377 = vshrl.u32 %v2376, 7
        %v2378 = vsub.s32 0, %v2377
        %v2379 = vrot.slane %v2054, %v2378
        %v2380 = vlaneseq
        %v2381 = vshrl.u32 %v2380, 7
        %v2382 = vsub.s32 1, %v2381
        %v2383 = vrot.slane %v2054, %v2382
        %2386 = vmatprep.subr.bf16.mxu0 %v2248
        %2387 = vmatpush1.bf16.msra.mxu0 %v2247
        %2388 = vmatprep.subr.bf16.mxu0 %v2250
        %2389 = vmatpush1.bf16.msra.mxu0 %v2249
        %2390 = vmatprep.subr.bf16.mxu0 %v2252
        %2391 = vmatpush1.bf16.msra.mxu0 %v2251
        %2392 = vmatprep.subr.bf16.mxu0 %v2254
        %2393 = vmatpush1.bf16.msra.mxu0 %v2253
        %2394 = vmatprep.subr.bf16.mxu0 %v2256
        %2395 = vmatpush1.bf16.msra.mxu0 %v2255
        %2396 = vmatprep.subr.bf16.mxu0 %v2258
        %2397 = vmatpush1.bf16.msra.mxu0 %v2257
        %2398 = vmatprep.subr.bf16.mxu0 %v2260
        %2399 = vmatpush1.bf16.msra.mxu0 %v2259
        %2400 = vmatprep.subr.bf16.mxu0 %v2262
        %2401 = vmatpush1.bf16.msra.mxu0 %v2261
        %2402 = vmatprep.subr.bf16.mxu0 %v2264
        %2403 = vmatpush1.bf16.msra.mxu0 %v2263
        %2404 = vmatprep.subr.bf16.mxu0 %v2266
        %2405 = vmatpush1.bf16.msra.mxu0 %v2265
        %2406 = vmatprep.subr.bf16.mxu0 %v2268
        %2407 = vmatpush1.bf16.msra.mxu0 %v2267
        %2408 = vmatprep.subr.bf16.mxu0 %v2270
        %2409 = vmatpush1.bf16.msra.mxu0 %v2269
        %2410 = vmatprep.subr.bf16.mxu0 %v2272
        %2411 = vmatpush1.bf16.msra.mxu0 %v2271
        %2412 = vmatprep.subr.bf16.mxu0 %v2274
        %2413 = vmatpush1.bf16.msra.mxu0 %v2273
        %2414 = vmatprep.subr.bf16.mxu0 %v2276
        %2415 = vmatpush1.bf16.msra.mxu0 %v2275
        %2416 = vmatprep.subr.bf16.mxu0 %v2278
        %2417 = vmatpush1.bf16.msra.mxu0 %v2277
        %2418 = vmatprep.mubr.bf16.mxu0 %v1987
        %2419 = vmatmul.mubr.bf16.gmra.mrb[0].mxu0 %v1986
        %v2420 = vpop.f32.mrb[0].mxu0
        %v2421 = vadd.f32 %v2379, %v2420
        %v2422 = vpop.f32.mrb[0].mxu0
        %v2423 = vadd.f32 %v2383, %v2422
        %v2424 = vpop.f32.mrb[0].mxu0
        %v2425 = vpop.f32.mrb[0].mxu0
        %2426 = vdwg.mxu0
        %2427 = vmatprep.subr.bf16.mxu0 %v2280
        %2428 = vmatpush1.bf16.msra.mxu0 %v2279
        %2429 = vmatprep.subr.bf16.mxu0 %v2282
        %2430 = vmatpush1.bf16.msra.mxu0 %v2281
        %2431 = vmatprep.subr.bf16.mxu0 %v2284
        %2432 = vmatpush1.bf16.msra.mxu0 %v2283
        %2433 = vmatprep.subr.bf16.mxu0 %v2286
        %2434 = vmatpush1.bf16.msra.mxu0 %v2285
        %2435 = vmatprep.subr.bf16.mxu0 %v2288
        %2436 = vmatpush1.bf16.msra.mxu0 %v2287
        %2437 = vmatprep.subr.bf16.mxu0 %v2290
        %2438 = vmatpush1.bf16.msra.mxu0 %v2289
        %2439 = vmatprep.subr.bf16.mxu0 %v2292
        %2440 = vmatpush1.bf16.msra.mxu0 %v2291
        %2441 = vmatprep.subr.bf16.mxu0 %v2294
        %2442 = vmatpush1.bf16.msra.mxu0 %v2293
        %2443 = vmatprep.subr.bf16.mxu0 %v2296
        %2444 = vmatpush1.bf16.msra.mxu0 %v2295
        %2445 = vmatprep.subr.bf16.mxu0 %v2298
        %2446 = vmatpush1.bf16.msra.mxu0 %v2297
        %2447 = vmatprep.subr.bf16.mxu0 %v2300
        %2448 = vmatpush1.bf16.msra.mxu0 %v2299
        %2449 = vmatprep.subr.bf16.mxu0 %v2302
        %2450 = vmatpush1.bf16.msra.mxu0 %v2301
        %2451 = vmatprep.subr.bf16.mxu0 %v2304
        %2452 = vmatpush1.bf16.msra.mxu0 %v2303
        %2453 = vmatprep.subr.bf16.mxu0 %v2306
        %2454 = vmatpush1.bf16.msra.mxu0 %v2305
        %2455 = vmatprep.subr.bf16.mxu0 %v2308
        %2456 = vmatpush1.bf16.msra.mxu0 %v2307
        %2457 = vmatprep.subr.bf16.mxu0 %v2310
        %2458 = vmatpush1.bf16.msra.mxu0 %v2309
        %2459 = vmatprep.mubr.bf16.mxu0 %v1989
        %2460 = vmatmul.mubr.bf16.gmra.mrb[0].mxu0 %v1988
        %v2461 = vpop.f32.mrb[0].mxu0
        %v2462 = vadd.f32 %v2421, %v2461
        %v2463 = vpop.f32.mrb[0].mxu0
        %v2464 = vadd.f32 %v2423, %v2463
        %v2465 = vpop.f32.mrb[0].mxu0
        %v2466 = vpop.f32.mrb[0].mxu0
        %2467 = vdwg.mxu0
        %v2468 = vmax.f32 %v2462, 0.0
        %v2469 = vmax.f32 %v2464, 0.0
        %v2470 = vpack.c.bf16 %v2468, %v2468
        %v2471 = vpack.c.bf16 %v2469, %v2469
        %v2472 = vld [vmem:[%s10] sm:$0xf]
        %v2473 = vld [vmem:[%s10 + $0x4] sm:$0xf]
        %v2474 = vld [vmem:[%s10 + $0x8] sm:$0xf]
        %v2475 = vld [vmem:[%s10 + $0xc] sm:$0xf]
        %v2476 = vld [vmem:[%s10 + $0x10] sm:$0xf]
        %v2477 = vld [vmem:[%s10 + $0x14] sm:$0xf]
        %v2478 = vld [vmem:[%s10 + $0x18] sm:$0xf]
        %v2479 = vld [vmem:[%s10 + $0x1c] sm:$0xf]
        %v2480 = vld [vmem:[%s10 + $0x20] sm:$0xf]
        %v2481 = vld [vmem:[%s10 + $0x24] sm:$0xf]
        %v2482 = vld [vmem:[%s10 + $0x28] sm:$0xf]
        %v2483 = vld [vmem:[%s10 + $0x2c] sm:$0xf]
        %v2484 = vld [vmem:[%s10 + $0x30] sm:$0xf]
        %v2485 = vld [vmem:[%s10 + $0x34] sm:$0xf]
        %v2486 = vld [vmem:[%s10 + $0x38] sm:$0xf]
        %v2487 = vld [vmem:[%s10 + $0x3c] sm:$0xf]
        %v2488 = vld [vmem:[%s10 + $0x40] sm:$0xf]
        %v2489 = vld [vmem:[%s10 + $0x44] sm:$0xf]
        %v2490 = vld [vmem:[%s10 + $0x48] sm:$0xf]
        %v2491 = vld [vmem:[%s10 + $0x4c] sm:$0xf]
        %v2492 = vld [vmem:[%s10 + $0x50] sm:$0xf]
        %v2493 = vld [vmem:[%s10 + $0x54] sm:$0xf]
        %v2494 = vld [vmem:[%s10 + $0x58] sm:$0xf]
        %v2495 = vld [vmem:[%s10 + $0x5c] sm:$0xf]
        %v2496 = vld [vmem:[%s10 + $0x60] sm:$0xf]
        %v2497 = vld [vmem:[%s10 + $0x64] sm:$0xf]
        %v2498 = vld [vmem:[%s10 + $0x68] sm:$0xf]
        %v2499 = vld [vmem:[%s10 + $0x6c] sm:$0xf]
        %v2500 = vld [vmem:[%s10 + $0x70] sm:$0xf]
        %v2501 = vld [vmem:[%s10 + $0x74] sm:$0xf]
        %v2502 = vld [vmem:[%s10 + $0x78] sm:$0xf]
        %v2503 = vld [vmem:[%s10 + $0x7c] sm:$0xf]
        %v2504 = vld [vmem:[%s11] sm:$0x1]
        %v2537 = vunpack.c.l.b16 %v2472
        %v2538 = vunpack.c.l.b16 %v2473
        %v2539 = vunpack.c.l.b16 %v2474
        %v2540 = vunpack.c.l.b16 %v2475
        %v2541 = vunpack.c.l.b16 %v2476
        %v2542 = vunpack.c.l.b16 %v2477
        %v2543 = vunpack.c.l.b16 %v2478
        %v2544 = vunpack.c.l.b16 %v2479
        %v2545 = vunpack.c.l.b16 %v2480
        %v2546 = vunpack.c.l.b16 %v2481
        %v2547 = vunpack.c.l.b16 %v2482
        %v2548 = vunpack.c.l.b16 %v2483
        %v2549 = vunpack.c.l.b16 %v2484
        %v2550 = vunpack.c.l.b16 %v2485
        %v2551 = vunpack.c.l.b16 %v2486
        %v2552 = vunpack.c.l.b16 %v2487
        %v2553 = vunpack.c.l.b16 %v2488
        %v2554 = vunpack.c.l.b16 %v2489
        %v2555 = vunpack.c.l.b16 %v2490
        %v2556 = vunpack.c.l.b16 %v2491
        %v2557 = vunpack.c.l.b16 %v2492
        %v2558 = vunpack.c.l.b16 %v2493
        %v2559 = vunpack.c.l.b16 %v2494
        %v2560 = vunpack.c.l.b16 %v2495
        %v2561 = vunpack.c.l.b16 %v2496
        %v2562 = vunpack.c.l.b16 %v2497
        %v2563 = vunpack.c.l.b16 %v2498
        %v2564 = vunpack.c.l.b16 %v2499
        %v2565 = vunpack.c.l.b16 %v2500
        %v2566 = vunpack.c.l.b16 %v2501
        %v2567 = vunpack.c.l.b16 %v2502
        %v2568 = vunpack.c.l.b16 %v2503
        %v2569 = vpack.c.b16 %v2538, %v2537
        %v2570 = vpack.c.b16 %v2540, %v2539
        %v2571 = vpack.c.b16 %v2542, %v2541
        %v2572 = vpack.c.b16 %v2544, %v2543
        %v2573 = vpack.c.b16 %v2546, %v2545
        %v2574 = vpack.c.b16 %v2548, %v2547
        %v2575 = vpack.c.b16 %v2550, %v2549
        %v2576 = vpack.c.b16 %v2552, %v2551
        %v2577 = vpack.c.b16 %v2554, %v2553
        %v2578 = vpack.c.b16 %v2556, %v2555
        %v2579 = vpack.c.b16 %v2558, %v2557
        %v2580 = vpack.c.b16 %v2560, %v2559
        %v2581 = vpack.c.b16 %v2562, %v2561
        %v2582 = vpack.c.b16 %v2564, %v2563
        %v2583 = vpack.c.b16 %v2566, %v2565
        %v2584 = vpack.c.b16 %v2568, %v2567
        %2601 = vmatprep.subr.bf16.mxu0 0
        %2602 = vmatpush1.bf16.msra.mxu0 %v2569
        %2603 = vmatprep.subr.bf16.mxu0 0
        %2604 = vmatpush1.bf16.msra.mxu0 %v2570
        %2605 = vmatprep.subr.bf16.mxu0 0
        %2606 = vmatpush1.bf16.msra.mxu0 %v2571
        %2607 = vmatprep.subr.bf16.mxu0 0
        %2608 = vmatpush1.bf16.msra.mxu0 %v2572
        %2609 = vmatprep.subr.bf16.mxu0 0
        %2610 = vmatpush1.bf16.msra.mxu0 %v2573
        %2611 = vmatprep.subr.bf16.mxu0 0
        %2612 = vmatpush1.bf16.msra.mxu0 %v2574
        %2613 = vmatprep.subr.bf16.mxu0 0
        %2614 = vmatpush1.bf16.msra.mxu0 %v2575
        %2615 = vmatprep.subr.bf16.mxu0 0
        %2616 = vmatpush1.bf16.msra.mxu0 %v2576
        %2617 = vmatprep.subr.bf16.mxu0 0
        %2618 = vmatpush1.bf16.msra.mxu0 %v2577
        %2619 = vmatprep.subr.bf16.mxu0 0
        %2620 = vmatpush1.bf16.msra.mxu0 %v2578
        %2621 = vmatprep.subr.bf16.mxu0 0
        %2622 = vmatpush1.bf16.msra.mxu0 %v2579
        %2623 = vmatprep.subr.bf16.mxu0 0
        %2624 = vmatpush1.bf16.msra.mxu0 %v2580
        %2625 = vmatprep.subr.bf16.mxu0 0
        %2626 = vmatpush1.bf16.msra.mxu0 %v2581
        %2627 = vmatprep.subr.bf16.mxu0 0
        %2628 = vmatpush1.bf16.msra.mxu0 %v2582
        %2629 = vmatprep.subr.bf16.mxu0 0
        %2630 = vmatpush1.bf16.msra.mxu0 %v2583
        %2631 = vmatprep.subr.bf16.mxu0 0
        %2632 = vmatpush1.bf16.msra.mxu0 %v2584
        %2633 = vmatprep.mubr.bf16.mxu0 %v2471
        %2634 = vmatmul.mubr.bf16.gmra.mrb[0].mxu0 %v2470
        %v2635 = vpop.f32.mrb[0].mxu0
        %v2636 = vadd.f32 %v2504, %v2635
        %v2637 = vpop.f32.mrb[0].mxu0
        %v2638 = vpop.f32.mrb[0].mxu0
        %v2639 = vpop.f32.mrb[0].mxu0
        %2640 = vdwg.mxu0
        %v2641 = vmax.f32 %v2636, 0.0
        %v2642 = vpack.c.bf16 %v2641, %v2641
        %v2643 = vld [vmem:[%s12] sm:$0xf]
        %v2644 = vld [vmem:[%s12 + $0x4] sm:$0xf]
        %v2645 = vld [vmem:[%s12 + $0x8] sm:$0xf]
        %v2646 = vld [vmem:[%s12 + $0xc] sm:$0xf]
        %v2647 = vld [vmem:[%s12 + $0x10] sm:$0xf]
        %v2648 = vld [vmem:[%s12 + $0x14] sm:$0xf]
        %v2649 = vld [vmem:[%s12 + $0x18] sm:$0xf]
        %v2650 = vld [vmem:[%s12 + $0x1c] sm:$0xf]
        %v2651 = vld [vmem:[%s12 + $0x20] sm:$0xf]
        %v2652 = vld [vmem:[%s12 + $0x24] sm:$0xf]
        %v2653 = vld [vmem:[%s12 + $0x28] sm:$0xf]
        %v2654 = vld [vmem:[%s12 + $0x2c] sm:$0xf]
        %v2655 = vld [vmem:[%s12 + $0x30] sm:$0xf]
        %v2656 = vld [vmem:[%s12 + $0x34] sm:$0xf]
        %v2657 = vld [vmem:[%s12 + $0x38] sm:$0xf]
        %v2658 = vld [vmem:[%s12 + $0x3c] sm:$0xf]
        %v2659 = vld [vmem:[%s13] sm:$0x1]
        %v2676 = vunpack.c.l.b16 %v2643
        %v2677 = vunpack.c.l.b16 %v2644
        %v2678 = vunpack.c.l.b16 %v2645
        %v2679 = vunpack.c.l.b16 %v2646
        %v2680 = vunpack.c.l.b16 %v2647
        %v2681 = vunpack.c.l.b16 %v2648
        %v2682 = vunpack.c.l.b16 %v2649
        %v2683 = vunpack.c.l.b16 %v2650
        %v2684 = vunpack.c.l.b16 %v2651
        %v2685 = vunpack.c.l.b16 %v2652
        %v2686 = vunpack.c.l.b16 %v2653
        %v2687 = vunpack.c.l.b16 %v2654
        %v2688 = vunpack.c.l.b16 %v2655
        %v2689 = vunpack.c.l.b16 %v2656
        %v2690 = vunpack.c.l.b16 %v2657
        %v2691 = vunpack.c.l.b16 %v2658
        %v2692 = vpack.c.b16 %v2677, %v2676
        %v2693 = vpack.c.b16 %v2679, %v2678
        %v2694 = vpack.c.b16 %v2681, %v2680
        %v2695 = vpack.c.b16 %v2683, %v2682
        %v2696 = vpack.c.b16 %v2685, %v2684
        %v2697 = vpack.c.b16 %v2687, %v2686
        %v2698 = vpack.c.b16 %v2689, %v2688
        %v2699 = vpack.c.b16 %v2691, %v2690
        %2708 = vmatprep.subr.bf16.mxu0 0
        %2709 = vmatpush1.bf16.msra.mxu0 %v2692
        %2710 = vmatprep.subr.bf16.mxu0 0
        %2711 = vmatpush1.bf16.msra.mxu0 %v2693
        %2712 = vmatprep.subr.bf16.mxu0 0
        %2713 = vmatpush1.bf16.msra.mxu0 %v2694
        %2714 = vmatprep.subr.bf16.mxu0 0
        %2715 = vmatpush1.bf16.msra.mxu0 %v2695
        %2716 = vmatprep.subr.bf16.mxu0 0
        %2717 = vmatpush1.bf16.msra.mxu0 %v2696
        %2718 = vmatprep.subr.bf16.mxu0 0
        %2719 = vmatpush1.bf16.msra.mxu0 %v2697
        %2720 = vmatprep.subr.bf16.mxu0 0
        %2721 = vmatpush1.bf16.msra.mxu0 %v2698
        %2722 = vmatprep.subr.bf16.mxu0 0
        %2723 = vmatpush1.bf16.msra.mxu0 %v2699
        %2724 = vmatprep.subr.bf16.mxu0 0
        %2725 = vmatpush1.bf16.msra.mxu0 0
        %2726 = vmatprep.subr.bf16.mxu0 0
        %2727 = vmatpush1.bf16.msra.mxu0 0
        %2728 = vmatprep.subr.bf16.mxu0 0
        %2729 = vmatpush1.bf16.msra.mxu0 0
        %2730 = vmatprep.subr.bf16.mxu0 0
        %2731 = vmatpush1.bf16.msra.mxu0 0
        %2732 = vmatprep.subr.bf16.mxu0 0
        %2733 = vmatpush1.bf16.msra.mxu0 0
        %2734 = vmatprep.subr.bf16.mxu0 0
        %2735 = vmatpush1.bf16.msra.mxu0 0
        %2736 = vmatprep.subr.bf16.mxu0 0
        %2737 = vmatpush1.bf16.msra.mxu0 0
        %2738 = vmatprep.subr.bf16.mxu0 0
        %2739 = vmatpush1.bf16.msra.mxu0 0
        %2740 = vmatprep.mubr.bf16.mxu0 0
        %2741 = vmatmul.mubr.bf16.gmra.mrb[0].mxu0 %v2642
        %v2742 = vpop.f32.mrb[0].mxu0
        %v2743 = vadd.f32 %v2659, %v2742
        %v2744 = vpop.f32.mrb[0].mxu0
        %v2745 = vpop.f32.mrb[0].mxu0
        %v2746 = vpop.f32.mrb[0].mxu0
        %2747 = vdwg.mxu0
        %v2748 = vmax.f32 %v2743, 0.0
        %v2749 = vld [vmem:[%s14] sm:$0x1]
        %v2750 = vmul.f32 %v2748, %v2749
        %vm2751 = vcmask 516096
        %v2752 = vsel %vm2751, %v2750, 0.0
        %2753 = vadd.xlane.f32.xlu0 %v2752
        %v2754 = vpop.xlane.xlu0 %2753
        %v2755 = vxor.u32 %v2754, 2147483648
        %v2756 = vmul.f32 %v2755, 1.442695
        %v2757 = vpow.pop %v2756
        %v2758 = vadd.f32 %v2757, 1.0
        %v2759 = vrcp.pop %v2758
        %v2760 = vmul.f32 1.0, %v2759
        %vm2761 = vcmask 0
        %2762 = vst.msk [vmem:[%s608] sm:$0x1] %vm2761, %v2760
        %p2763 = scmp.lt.s32.totalorder %s33, 1
        %s2764 = scalar_select %p2763, %s33, 1
        %s2765 = scalar_lea.vmem %s15, %s2764
        // Predicated region
        $region113: #{tpu_custom_call.1} parent=79 // pred_check
          %p2766 = pneg %p371
        $region114: #{tpu_custom_call.1} parent=79 // pred_check_branch
          %2768 = sbr.rel (%p2766) target = $region116
        $region115: #{tpu_custom_call.1} parent=79 // pred_region
          _
        $region116: #{tpu_custom_call.1} parent=79 // pred_fallthru
          _
      $region80: #{tpu_custom_call.1} parent=5 // pred_fallthru
        _
      %p2769 = scmp.le.s32.totalorder 2, %s28
      // Predicated region
      $region117: #{tpu_custom_call.1} parent=5 // pred_check
        %p2770 = pneg %p2769
      $region118: #{tpu_custom_call.1} parent=5 // pred_check_branch
        %2772 = sbr.rel (%p2770) target = $region120
      $region119: #{tpu_custom_call.1} parent=5 // pred_region
        %s2773 = ssub.s32 %s28, 2
        // Predicated region
        $region121: #{tpu_custom_call.1} parent=119 // pred_check
          %p2774 = pneg %p377
        $region122: #{tpu_custom_call.1} parent=119 // pred_check_branch
          %2776 = sbr.rel (%p2774) target = $region124
        $region123: #{tpu_custom_call.1} parent=119 // pred_region
          %p2777 = scmp.lt.s32.totalorder %s34, 1
          %s2778 = scalar_select %p2777, %s34, 1
          %s2779 = scalar_lea.vmem %s15, %s2778
        $region124: #{tpu_custom_call.1} parent=119 // pred_fallthru
          _
      $region120: #{tpu_custom_call.1} parent=5 // pred_fallthru
        _
    $region6: #{tpu_custom_call.1} parent=1 // loop_footer
      %s32 = sadd.s32 1, %s28
    $region7: #{tpu_custom_call.1} parent=1 // loop_footer_branch
      %27 = sbr.rel target = $region3
    $region8: #{tpu_custom_call.1} parent=1 // loop_exit
      _
    %2780 = vsyncpa [#allocation3], 1
    %s2781 = scalar_lea.sflag [#allocation3], 1
    %2782 = vsyncpa %s2781, 1
    %2783 = vsyncpa [#allocation5], 1
    %2784 = vsyncpa [#allocation8], 1
    %2785 = vsyncpa [#allocation11], 1
    %2786 = vsyncpa [#allocation14], 1

</llo_original>
